<compile_context>
chip_gen: v5e
topology: v5e:2x2
jax: 0.10.0
libtpu: 0.0.40
codegen_flags: <defaults>
</compile_context>

<pallas_src>
import functools
import math

import jax
import jax.numpy as jnp
from jax import lax
from jax.experimental import pallas as pl
from jax.experimental.pallas import tpu as pltpu


# ---------------------------------------------------------------------------
# Fused decoder-layer kernel (grid over batch).
#   x_ref     : (1, L, D)  decoder hidden state (queries + residual)
#   cross_ref : (1, S, D)  encoder memory (keys/values for cross attention)
#   self/cross attention params : wq/wk/wv/wo (D, D), bq/bk/bv/bo (1, D),
#                                 LayerNorm gamma/beta (1, D)
#   FFN params: w1 (D, F), b1 (1, F), w2 (F, D), b2 (1, D), ln3 gamma/beta (1, D)
# Outputs: x_out (1, L, D) [+ self-attn map (1, H, L, L), cross-attn map
#          (1, H, L, S) when emit_attn].
# ---------------------------------------------------------------------------
def _decoder_layer_kernel(
    x_ref, cross_ref,
    s_wq, s_bq, s_wk, s_bk, s_wv, s_bv, s_wo, s_bo, s_g, s_b,
    c_wq, c_bq, c_wk, c_bk, c_wv, c_bv, c_wo, c_bo, c_g, c_b,
    w1_ref, b1_ref, w2_ref, b2_ref, g3_ref, b3_ref,
    o_ref, *attn_refs,
    n_heads, dh, scale, eps, emit_attn):

    def layernorm(z, g, b):
        mu = jnp.mean(z, axis=-1, keepdims=True)
        var = jnp.mean((z - mu) ** 2, axis=-1, keepdims=True)
        return (z - mu) * lax.rsqrt(var + eps) * g + b

    def mha_res_ln(xq, src, wq, bq, wk, bk, wv, bv, wo, bo, g, b, attn_ref):
        # Full-width (lane-dense) projections: one MXU matmul each.
        q = jnp.dot(xq, wq[...], preferred_element_type=jnp.float32) + bq[...]
        k = jnp.dot(src, wk[...], preferred_element_type=jnp.float32) + bk[...]
        v = jnp.dot(src, wv[...], preferred_element_type=jnp.float32) + bv[...]
        ctxs, probs = [], []
        for h in range(n_heads):            # static unroll (small H)
            qh = q[:, h * dh:(h + 1) * dh]
            kh = k[:, h * dh:(h + 1) * dh]
            vh = v[:, h * dh:(h + 1) * dh]
            # Q K^T without materializing a transposed copy.
            s = lax.dot_general(qh, kh, (((1,), (1,)), ((), ())),
                                preferred_element_type=jnp.float32) * scale
            s = s - jnp.max(s, axis=-1, keepdims=True)
            e = jnp.exp(s)
            # Exact divide: these probabilities are returned to the caller.
            p = e / jnp.sum(e, axis=-1, keepdims=True)
            if emit_attn:
                probs.append(p)
            ctxs.append(jnp.dot(p, vh, preferred_element_type=jnp.float32))
        if emit_attn:
            # Single whole-slab store of the per-batch attention map.
            attn_ref[0] = jnp.stack(probs, axis=0).astype(attn_ref.dtype)
        ctx = jnp.concatenate(ctxs, axis=-1)                    # (L, D)
        out = jnp.dot(ctx, wo[...], preferred_element_type=jnp.float32) + bo[...]
        return layernorm(xq + out, g[...], b[...])

    x = x_ref[0].astype(jnp.float32)        # (L, D)
    src = cross_ref[0].astype(jnp.float32)  # (S, D)

    # Self attention + residual + LayerNorm1.
    x = mha_res_ln(x, x, s_wq, s_bq, s_wk, s_bk, s_wv, s_bv, s_wo, s_bo,
                   s_g, s_b, attn_refs[0] if emit_attn else None)
    # Cross attention + residual + LayerNorm2.
    x = mha_res_ln(x, src, c_wq, c_bq, c_wk, c_bk, c_wv, c_bv, c_wo, c_bo,
                   c_g, c_b, attn_refs[1] if emit_attn else None)

    # Position-wise FFN (Conv1d k=1 == per-position linear) + residual + LN3.
    h = jnp.dot(x, w1_ref[...], preferred_element_type=jnp.float32) + b1_ref[...]
    h = jnp.maximum(h, 0.0)
    y = jnp.dot(h, w2_ref[...], preferred_element_type=jnp.float32) + b2_ref[...]
    o_ref[0] = layernorm(x + y, g3_ref[...], b3_ref[...]).astype(o_ref.dtype)


def decoder_layer(x, cross, lp, n_heads, return_attn, eps=1e-5):
    """Fused decoder layer. x: (B, L, D), cross: (B, S, D)."""
    B, L, D = x.shape
    S = cross.shape[1]
    F = lp["w1"].shape[1]
    dh = D // n_heads
    scale = 1.0 / math.sqrt(dh)

    kernel = functools.partial(_decoder_layer_kernel, n_heads=n_heads, dh=dh,
                               scale=scale, eps=eps, emit_attn=return_attn)

    def w_spec(shape):
        if len(shape) == 2:
            return pl.BlockSpec(shape, lambda b: (0, 0))
        return pl.BlockSpec(shape, lambda b: (0, 0, 0))

    attn_wspecs = [
        w_spec((D, D)), w_spec((1, D)),   # wq, bq
        w_spec((D, D)), w_spec((1, D)),   # wk, bk
        w_spec((D, D)), w_spec((1, D)),   # wv, bv
        w_spec((D, D)), w_spec((1, D)),   # wo, bo
        w_spec((1, D)), w_spec((1, D)),   # ln gamma, beta
    ]
    in_specs = (
        [pl.BlockSpec((1, L, D), lambda b: (b, 0, 0)),    # x
         pl.BlockSpec((1, S, D), lambda b: (b, 0, 0))]    # cross
        + attn_wspecs + attn_wspecs
        + [w_spec((D, F)), w_spec((1, F)),                # w1, b1
           w_spec((F, D)), w_spec((1, D)),                # w2, b2
           w_spec((1, D)), w_spec((1, D))]                # ln3 gamma, beta
    )

    if return_attn:
        out_shape = (jax.ShapeDtypeStruct((B, L, D), x.dtype),
                     jax.ShapeDtypeStruct((B, n_heads, L, L), jnp.float32),
                     jax.ShapeDtypeStruct((B, n_heads, L, S), jnp.float32))
        out_specs = (pl.BlockSpec((1, L, D), lambda b: (b, 0, 0)),
                     pl.BlockSpec((1, n_heads, L, L), lambda b: (b, 0, 0, 0)),
                     pl.BlockSpec((1, n_heads, L, S), lambda b: (b, 0, 0, 0)))
    else:
        out_shape = jax.ShapeDtypeStruct((B, L, D), x.dtype)
        out_specs = pl.BlockSpec((1, L, D), lambda b: (b, 0, 0))

    sp, cp = lp["self_attn"], lp["cross_attn"]
    args = (x, cross,
            sp["wq"], sp["bq"], sp["wk"], sp["bk"], sp["wv"], sp["bv"],
            sp["wo"], sp["bo"], sp["ln_g"], sp["ln_b"],
            cp["wq"], cp["bq"], cp["wk"], cp["bk"], cp["wv"], cp["bv"],
            cp["wo"], cp["bo"], cp["ln_g"], cp["ln_b"],
            lp["w1"], lp["b1"], lp["w2"], lp["b2"], lp["ln3_g"], lp["ln3_b"])

    out = pl.pallas_call(
        kernel,
        out_shape=out_shape,
        grid=(B,),
        in_specs=in_specs,
        out_specs=out_specs,
        compiler_params=pltpu.CompilerParams(dimension_semantics=("parallel",)),
    )(*args)

    if return_attn:
        return out[0], out[1], out[2]
    return out, None, None


# ---------------------------------------------------------------------------
# Final fused LayerNorm (optional) + projection, tiled over rows.
# ---------------------------------------------------------------------------
def _ln_proj_kernel(x_ref, g_ref, b_ref, w_ref, bp_ref, o_ref, *, eps, use_norm):
    z = x_ref[...].astype(jnp.float32)
    if use_norm:
        mu = jnp.mean(z, axis=-1, keepdims=True)
        var = jnp.mean((z - mu) ** 2, axis=-1, keepdims=True)
        z = (z - mu) * lax.rsqrt(var + eps)
        z = z * g_ref[...] + b_ref[...]
    out = jnp.dot(z, w_ref[...], preferred_element_type=jnp.float32) + bp_ref[...]
    o_ref[...] = out.astype(o_ref.dtype)


def pallas_ln_proj(x, gamma, beta, wp, bp, use_norm, eps=1e-5, block_m=512):
    M, D = x.shape
    C = wp.shape[1]
    if gamma is None:
        gamma = jnp.ones((1, D), jnp.float32)
        beta = jnp.zeros((1, D), jnp.float32)
    tm = M if M <= block_m else block_m
    grid = (pl.cdiv(M, tm),)
    kernel = functools.partial(_ln_proj_kernel, eps=eps, use_norm=use_norm)
    return pl.pallas_call(
        kernel,
        out_shape=jax.ShapeDtypeStruct((M, C), x.dtype),
        grid=grid,
        in_specs=[
            pl.BlockSpec((tm, D), lambda i: (i, 0)),
            pl.BlockSpec((1, D), lambda i: (0, 0)),
            pl.BlockSpec((1, D), lambda i: (0, 0)),
            pl.BlockSpec((D, C), lambda i: (0, 0)),
            pl.BlockSpec((1, C), lambda i: (0, 0)),
        ],
        out_specs=pl.BlockSpec((tm, C), lambda i: (i, 0)),
        compiler_params=pltpu.CompilerParams(dimension_semantics=("parallel",)),
    )(x, gamma, beta, wp, bp)


def _ln_kernel(x_ref, g_ref, b_ref, o_ref, *, eps):
    z = x_ref[...].astype(jnp.float32)
    mu = jnp.mean(z, axis=-1, keepdims=True)
    var = jnp.mean((z - mu) ** 2, axis=-1, keepdims=True)
    zn = (z - mu) * lax.rsqrt(var + eps)
    o_ref[...] = (zn * g_ref[...] + b_ref[...]).astype(o_ref.dtype)


def pallas_layernorm(x, gamma, beta, eps=1e-5, block_m=512):
    M, D = x.shape
    tm = M if M <= block_m else block_m
    grid = (pl.cdiv(M, tm),)
    kernel = functools.partial(_ln_kernel, eps=eps)
    return pl.pallas_call(
        kernel,
        out_shape=jax.ShapeDtypeStruct((M, D), x.dtype),
        grid=grid,
        in_specs=[
            pl.BlockSpec((tm, D), lambda i: (i, 0)),
            pl.BlockSpec((1, D), lambda i: (0, 0)),
            pl.BlockSpec((1, D), lambda i: (0, 0)),
        ],
        out_specs=pl.BlockSpec((tm, D), lambda i: (i, 0)),
        compiler_params=pltpu.CompilerParams(dimension_semantics=("parallel",)),
    )(x, gamma, beta)


# ----------------------------- model (glue) ---------------------------------

def decoder_forward(x, cross, params, n_heads):
    """Matches Decoder.forward: loop layers, then norm, then projection."""
    n_layers = len(params["layers"])
    x_attn = cross_attn = None
    for li, lp in enumerate(params["layers"]):
        last = li == n_layers - 1
        x, a_self, a_cross = decoder_layer(x, cross, lp, n_heads, return_attn=last)
        if last:
            x_attn, cross_attn = a_self, a_cross

    B, L, D = x.shape
    x2 = x.reshape(B * L, D)
    has_norm = params.get("norm_g") is not None
    has_proj = params.get("proj_w") is not None
    if has_proj:
        x2 = pallas_ln_proj(x2,
                            params["norm_g"] if has_norm else None,
                            params["norm_b"] if has_norm else None,
                            params["proj_w"], params["proj_b"], use_norm=has_norm)
    elif has_norm:
        x2 = pallas_layernorm(x2, params["norm_g"], params["norm_b"])
    x = x2.reshape(B, L, -1)
    return x, x_attn, cross_attn


# ----------------------------- param init -----------------------------------

def _dense(key, fan_in, fan_out):
    return jax.random.normal(key, (fan_in, fan_out), jnp.float32) * 0.02


def _attn_params(keys, d_model):
    kq, kk, kv, ko = keys
    return dict(
        wq=_dense(kq, d_model, d_model), bq=jnp.zeros((1, d_model), jnp.float32),
        wk=_dense(kk, d_model, d_model), bk=jnp.zeros((1, d_model), jnp.float32),
        wv=_dense(kv, d_model, d_model), bv=jnp.zeros((1, d_model), jnp.float32),
        wo=_dense(ko, d_model, d_model), bo=jnp.zeros((1, d_model), jnp.float32),
        ln_g=jnp.ones((1, d_model), jnp.float32),
        ln_b=jnp.zeros((1, d_model), jnp.float32),
    )


def init_params(key, d_model, n_heads, d_ff, c_out, n_layers):
    layers = []
    for _ in range(n_layers):
        key, *ks = jax.random.split(key, 11)
        lp = dict(
            self_attn=_attn_params(ks[0:4], d_model),
            cross_attn=_attn_params(ks[4:8], d_model),
            w1=_dense(ks[8], d_model, d_ff), b1=jnp.zeros((1, d_ff), jnp.float32),
            w2=_dense(ks[9], d_ff, d_model), b2=jnp.zeros((1, d_model), jnp.float32),
            ln3_g=jnp.ones((1, d_model), jnp.float32),
            ln3_b=jnp.zeros((1, d_model), jnp.float32),
        )
        layers.append(lp)
    key, kp = jax.random.split(key)
    return dict(
        layers=layers,
        norm_g=jnp.ones((1, d_model), jnp.float32),
        norm_b=jnp.zeros((1, d_model), jnp.float32),
        proj_w=_dense(kp, d_model, c_out),
        proj_b=jnp.zeros((1, c_out), jnp.float32),
    )


# --------------------------------- main --------------------------------------

if __name__ == "__main__":
    B, L_dec, L_cross = 2, 8, 8
    d_model, n_heads, d_ff, c_out, n_layers = 32, 4, 64, 4, 2

    key = jax.random.PRNGKey(0)
    k_x, k_c, k_p = jax.random.split(key, 3)
    x = jax.random.normal(k_x, (B, L_dec, d_model), jnp.float32)
    cross = jax.random.normal(k_c, (B, L_cross, d_model), jnp.float32)
    params = init_params(k_p, d_model, n_heads, d_ff, c_out, n_layers)

    out, x_attn, cross_attn = decoder_forward(x, cross, params, n_heads)
    jax.block_until_ready((out, x_attn, cross_attn))

    assert out.shape == (B, L_dec, c_out)
    assert x_attn.shape == (B, n_heads, L_dec, L_dec)
    assert cross_attn.shape == (B, n_heads, L_dec, L_cross)
    print("KERNEL_OK")
</pallas_src>

<mosaic_0001>
module attributes {stable_mosaic.version = 11 : i64} {
  func.func @_decoder_layer_kernel(%arg0: i32, %arg1: memref<1x8x32xf32, #tpu.memory_space<vmem>>, %arg2: memref<1x8x32xf32, #tpu.memory_space<vmem>>, %arg3: memref<32x32xf32, #tpu.memory_space<vmem>>, %arg4: memref<1x32xf32, #tpu.memory_space<vmem>>, %arg5: memref<32x32xf32, #tpu.memory_space<vmem>>, %arg6: memref<1x32xf32, #tpu.memory_space<vmem>>, %arg7: memref<32x32xf32, #tpu.memory_space<vmem>>, %arg8: memref<1x32xf32, #tpu.memory_space<vmem>>, %arg9: memref<32x32xf32, #tpu.memory_space<vmem>>, %arg10: memref<1x32xf32, #tpu.memory_space<vmem>>, %arg11: memref<1x32xf32, #tpu.memory_space<vmem>>, %arg12: memref<1x32xf32, #tpu.memory_space<vmem>>, %arg13: memref<32x32xf32, #tpu.memory_space<vmem>>, %arg14: memref<1x32xf32, #tpu.memory_space<vmem>>, %arg15: memref<32x32xf32, #tpu.memory_space<vmem>>, %arg16: memref<1x32xf32, #tpu.memory_space<vmem>>, %arg17: memref<32x32xf32, #tpu.memory_space<vmem>>, %arg18: memref<1x32xf32, #tpu.memory_space<vmem>>, %arg19: memref<32x32xf32, #tpu.memory_space<vmem>>, %arg20: memref<1x32xf32, #tpu.memory_space<vmem>>, %arg21: memref<1x32xf32, #tpu.memory_space<vmem>>, %arg22: memref<1x32xf32, #tpu.memory_space<vmem>>, %arg23: memref<32x64xf32, #tpu.memory_space<vmem>>, %arg24: memref<1x64xf32, #tpu.memory_space<vmem>>, %arg25: memref<64x32xf32, #tpu.memory_space<vmem>>, %arg26: memref<1x32xf32, #tpu.memory_space<vmem>>, %arg27: memref<1x32xf32, #tpu.memory_space<vmem>>, %arg28: memref<1x32xf32, #tpu.memory_space<vmem>>, %arg29: memref<1x8x32xf32, #tpu.memory_space<vmem>>) attributes {dimension_semantics = [#tpu.dimension_semantics<parallel>], iteration_bounds = array<i64: 2>, scalar_prefetch = 0 : i64, scratch_operands = 0 : i64, tpu.core_type = #tpu.core_type<tc>, window_params = [{transform_indices = @transform_0, window_bounds = array<i64: 1, 8, 32>}, {transform_indices = @transform_1, window_bounds = array<i64: 1, 8, 32>}, {pipeline_mode = #tpu.pipeline_mode<synchronous>, transform_indices = @transform_2, window_bounds = array<i64: 32, 32>}, {pipeline_mode = #tpu.pipeline_mode<synchronous>, transform_indices = @transform_3, window_bounds = array<i64: 1, 32>}, {pipeline_mode = #tpu.pipeline_mode<synchronous>, transform_indices = @transform_4, window_bounds = array<i64: 32, 32>}, {pipeline_mode = #tpu.pipeline_mode<synchronous>, transform_indices = @transform_5, window_bounds = array<i64: 1, 32>}, {pipeline_mode = #tpu.pipeline_mode<synchronous>, transform_indices = @transform_6, window_bounds = array<i64: 32, 32>}, {pipeline_mode = #tpu.pipeline_mode<synchronous>, transform_indices = @transform_7, window_bounds = array<i64: 1, 32>}, {pipeline_mode = #tpu.pipeline_mode<synchronous>, transform_indices = @transform_8, window_bounds = array<i64: 32, 32>}, {pipeline_mode = #tpu.pipeline_mode<synchronous>, transform_indices = @transform_9, window_bounds = array<i64: 1, 32>}, {pipeline_mode = #tpu.pipeline_mode<synchronous>, transform_indices = @transform_10, window_bounds = array<i64: 1, 32>}, {pipeline_mode = #tpu.pipeline_mode<synchronous>, transform_indices = @transform_11, window_bounds = array<i64: 1, 32>}, {pipeline_mode = #tpu.pipeline_mode<synchronous>, transform_indices = @transform_12, window_bounds = array<i64: 32, 32>}, {pipeline_mode = #tpu.pipeline_mode<synchronous>, transform_indices = @transform_13, window_bounds = array<i64: 1, 32>}, {pipeline_mode = #tpu.pipeline_mode<synchronous>, transform_indices = @transform_14, window_bounds = array<i64: 32, 32>}, {pipeline_mode = #tpu.pipeline_mode<synchronous>, transform_indices = @transform_15, window_bounds = array<i64: 1, 32>}, {pipeline_mode = #tpu.pipeline_mode<synchronous>, transform_indices = @transform_16, window_bounds = array<i64: 32, 32>}, {pipeline_mode = #tpu.pipeline_mode<synchronous>, transform_indices = @transform_17, window_bounds = array<i64: 1, 32>}, {pipeline_mode = #tpu.pipeline_mode<synchronous>, transform_indices = @transform_18, window_bounds = array<i64: 32, 32>}, {pipeline_mode = #tpu.pipeline_mode<synchronous>, transform_indices = @transform_19, window_bounds = array<i64: 1, 32>}, {pipeline_mode = #tpu.pipeline_mode<synchronous>, transform_indices = @transform_20, window_bounds = array<i64: 1, 32>}, {pipeline_mode = #tpu.pipeline_mode<synchronous>, transform_indices = @transform_21, window_bounds = array<i64: 1, 32>}, {pipeline_mode = #tpu.pipeline_mode<synchronous>, transform_indices = @transform_22, window_bounds = array<i64: 32, 64>}, {pipeline_mode = #tpu.pipeline_mode<synchronous>, transform_indices = @transform_23, window_bounds = array<i64: 1, 64>}, {pipeline_mode = #tpu.pipeline_mode<synchronous>, transform_indices = @transform_24, window_bounds = array<i64: 64, 32>}, {pipeline_mode = #tpu.pipeline_mode<synchronous>, transform_indices = @transform_25, window_bounds = array<i64: 1, 32>}, {pipeline_mode = #tpu.pipeline_mode<synchronous>, transform_indices = @transform_26, window_bounds = array<i64: 1, 32>}, {pipeline_mode = #tpu.pipeline_mode<synchronous>, transform_indices = @transform_27, window_bounds = array<i64: 1, 32>}, {transform_indices = @transform_28, window_bounds = array<i64: 1, 8, 32>}]} {
    %c0 = arith.constant 0 : index
    %c0_0 = arith.constant 0 : index
    %c0_1 = arith.constant 0 : index
    %0 = vector.load %arg1[%c0, %c0_0, %c0_1] : memref<1x8x32xf32, #tpu.memory_space<vmem>>, vector<1x8x32xf32>
    %1 = vector.shape_cast %0 : vector<1x8x32xf32> to vector<8x32xf32>
    %c0_2 = arith.constant 0 : index
    %c0_3 = arith.constant 0 : index
    %c0_4 = arith.constant 0 : index
    %2 = vector.load %arg2[%c0_2, %c0_3, %c0_4] : memref<1x8x32xf32, #tpu.memory_space<vmem>>, vector<1x8x32xf32>
    %3 = vector.shape_cast %2 : vector<1x8x32xf32> to vector<8x32xf32>
    %c0_5 = arith.constant 0 : index
    %c0_6 = arith.constant 0 : index
    %4 = vector.load %arg3[%c0_5, %c0_6] : memref<32x32xf32, #tpu.memory_space<vmem>>, vector<32x32xf32>
    %cst = arith.constant dense<0.000000e+00> : vector<8x32xf32>
    %5 = tpu.matmul %1, %4, %cst {dimension_numbers = #tpu.dot_dimension_numbers<[1], [0], [0], [1], [0, 0, 1, 1], [], []>} : vector<8x32xf32>, vector<32x32xf32>, vector<8x32xf32> -> vector<8x32xf32>
    %c0_7 = arith.constant 0 : index
    %c0_8 = arith.constant 0 : index
    %6 = vector.load %arg4[%c0_7, %c0_8] : memref<1x32xf32, #tpu.memory_space<vmem>>, vector<1x32xf32>
    %7 = vector.broadcast %6 : vector<1x32xf32> to vector<8x32xf32>
    %8 = arith.addf %5, %7 : vector<8x32xf32>
    %c0_9 = arith.constant 0 : index
    %c0_10 = arith.constant 0 : index
    %9 = vector.load %arg5[%c0_9, %c0_10] : memref<32x32xf32, #tpu.memory_space<vmem>>, vector<32x32xf32>
    %cst_11 = arith.constant dense<0.000000e+00> : vector<8x32xf32>
    %10 = tpu.matmul %1, %9, %cst_11 {dimension_numbers = #tpu.dot_dimension_numbers<[1], [0], [0], [1], [0, 0, 1, 1], [], []>} : vector<8x32xf32>, vector<32x32xf32>, vector<8x32xf32> -> vector<8x32xf32>
    %c0_12 = arith.constant 0 : index
    %c0_13 = arith.constant 0 : index
    %11 = vector.load %arg6[%c0_12, %c0_13] : memref<1x32xf32, #tpu.memory_space<vmem>>, vector<1x32xf32>
    %12 = vector.broadcast %11 : vector<1x32xf32> to vector<8x32xf32>
    %13 = arith.addf %10, %12 : vector<8x32xf32>
    %c0_14 = arith.constant 0 : index
    %c0_15 = arith.constant 0 : index
    %14 = vector.load %arg7[%c0_14, %c0_15] : memref<32x32xf32, #tpu.memory_space<vmem>>, vector<32x32xf32>
    %cst_16 = arith.constant dense<0.000000e+00> : vector<8x32xf32>
    %15 = tpu.matmul %1, %14, %cst_16 {dimension_numbers = #tpu.dot_dimension_numbers<[1], [0], [0], [1], [0, 0, 1, 1], [], []>} : vector<8x32xf32>, vector<32x32xf32>, vector<8x32xf32> -> vector<8x32xf32>
    %c0_17 = arith.constant 0 : index
    %c0_18 = arith.constant 0 : index
    %16 = vector.load %arg8[%c0_17, %c0_18] : memref<1x32xf32, #tpu.memory_space<vmem>>, vector<1x32xf32>
    %17 = vector.broadcast %16 : vector<1x32xf32> to vector<8x32xf32>
    %18 = arith.addf %15, %17 : vector<8x32xf32>
    %19 = vector.extract_strided_slice %8 {offsets = [0, 0], sizes = [8, 8], strides = [1, 1]} : vector<8x32xf32> to vector<8x8xf32>
    %20 = vector.extract_strided_slice %13 {offsets = [0, 0], sizes = [8, 8], strides = [1, 1]} : vector<8x32xf32> to vector<8x8xf32>
    %21 = vector.extract_strided_slice %18 {offsets = [0, 0], sizes = [8, 8], strides = [1, 1]} : vector<8x32xf32> to vector<8x8xf32>
    %cst_19 = arith.constant dense<0.000000e+00> : vector<8x8xf32>
    %22 = tpu.matmul %19, %20, %cst_19 {dimension_numbers = #tpu.dot_dimension_numbers<[1], [1], [0], [0], [0, 0, 1, 0], [], []>} : vector<8x8xf32>, vector<8x8xf32>, vector<8x8xf32> -> vector<8x8xf32>
    %cst_20 = arith.constant 0.353553385 : f32
    %23 = vector.broadcast %cst_20 : f32 to vector<8x8xf32>
    %24 = arith.mulf %22, %23 : vector<8x8xf32>
    %cst_21 = arith.constant dense<0xFF800000> : vector<8xf32>
    %25 = vector.multi_reduction <maximumf>, %24, %cst_21 [1] : vector<8x8xf32> to vector<8xf32>
    %26 = vector.shape_cast %25 : vector<8xf32> to vector<8x1xf32>
    %27 = vector.broadcast %26 : vector<8x1xf32> to vector<8x8xf32>
    %28 = arith.subf %24, %27 : vector<8x8xf32>
    %29 = math.exp %28 : vector<8x8xf32>
    %cst_22 = arith.constant dense<0.000000e+00> : vector<8xf32>
    %30 = vector.multi_reduction <add>, %29, %cst_22 [1] : vector<8x8xf32> to vector<8xf32>
    %31 = vector.shape_cast %30 : vector<8xf32> to vector<8x1xf32>
    %32 = vector.broadcast %31 : vector<8x1xf32> to vector<8x8xf32>
    %33 = arith.divf %29, %32 : vector<8x8xf32>
    %cst_23 = arith.constant dense<0.000000e+00> : vector<8x8xf32>
    %34 = tpu.matmul %33, %21, %cst_23 {dimension_numbers = #tpu.dot_dimension_numbers<[1], [0], [0], [1], [0, 0, 1, 1], [], []>} : vector<8x8xf32>, vector<8x8xf32>, vector<8x8xf32> -> vector<8x8xf32>
    %35 = vector.extract_strided_slice %8 {offsets = [0, 8], sizes = [8, 8], strides = [1, 1]} : vector<8x32xf32> to vector<8x8xf32>
    %36 = vector.extract_strided_slice %13 {offsets = [0, 8], sizes = [8, 8], strides = [1, 1]} : vector<8x32xf32> to vector<8x8xf32>
    %37 = vector.extract_strided_slice %18 {offsets = [0, 8], sizes = [8, 8], strides = [1, 1]} : vector<8x32xf32> to vector<8x8xf32>
    %cst_24 = arith.constant dense<0.000000e+00> : vector<8x8xf32>
    %38 = tpu.matmul %35, %36, %cst_24 {dimension_numbers = #tpu.dot_dimension_numbers<[1], [1], [0], [0], [0, 0, 1, 0], [], []>} : vector<8x8xf32>, vector<8x8xf32>, vector<8x8xf32> -> vector<8x8xf32>
    %cst_25 = arith.constant 0.353553385 : f32
    %39 = vector.broadcast %cst_25 : f32 to vector<8x8xf32>
    %40 = arith.mulf %38, %39 : vector<8x8xf32>
    %cst_26 = arith.constant dense<0xFF800000> : vector<8xf32>
    %41 = vector.multi_reduction <maximumf>, %40, %cst_26 [1] : vector<8x8xf32> to vector<8xf32>
    %42 = vector.shape_cast %41 : vector<8xf32> to vector<8x1xf32>
    %43 = vector.broadcast %42 : vector<8x1xf32> to vector<8x8xf32>
    %44 = arith.subf %40, %43 : vector<8x8xf32>
    %45 = math.exp %44 : vector<8x8xf32>
    %cst_27 = arith.constant dense<0.000000e+00> : vector<8xf32>
    %46 = vector.multi_reduction <add>, %45, %cst_27 [1] : vector<8x8xf32> to vector<8xf32>
    %47 = vector.shape_cast %46 : vector<8xf32> to vector<8x1xf32>
    %48 = vector.broadcast %47 : vector<8x1xf32> to vector<8x8xf32>
    %49 = arith.divf %45, %48 : vector<8x8xf32>
    %cst_28 = arith.constant dense<0.000000e+00> : vector<8x8xf32>
    %50 = tpu.matmul %49, %37, %cst_28 {dimension_numbers = #tpu.dot_dimension_numbers<[1], [0], [0], [1], [0, 0, 1, 1], [], []>} : vector<8x8xf32>, vector<8x8xf32>, vector<8x8xf32> -> vector<8x8xf32>
    %51 = vector.extract_strided_slice %8 {offsets = [0, 16], sizes = [8, 8], strides = [1, 1]} : vector<8x32xf32> to vector<8x8xf32>
    %52 = vector.extract_strided_slice %13 {offsets = [0, 16], sizes = [8, 8], strides = [1, 1]} : vector<8x32xf32> to vector<8x8xf32>
    %53 = vector.extract_strided_slice %18 {offsets = [0, 16], sizes = [8, 8], strides = [1, 1]} : vector<8x32xf32> to vector<8x8xf32>
    %cst_29 = arith.constant dense<0.000000e+00> : vector<8x8xf32>
    %54 = tpu.matmul %51, %52, %cst_29 {dimension_numbers = #tpu.dot_dimension_numbers<[1], [1], [0], [0], [0, 0, 1, 0], [], []>} : vector<8x8xf32>, vector<8x8xf32>, vector<8x8xf32> -> vector<8x8xf32>
    %cst_30 = arith.constant 0.353553385 : f32
    %55 = vector.broadcast %cst_30 : f32 to vector<8x8xf32>
    %56 = arith.mulf %54, %55 : vector<8x8xf32>
    %cst_31 = arith.constant dense<0xFF800000> : vector<8xf32>
    %57 = vector.multi_reduction <maximumf>, %56, %cst_31 [1] : vector<8x8xf32> to vector<8xf32>
    %58 = vector.shape_cast %57 : vector<8xf32> to vector<8x1xf32>
    %59 = vector.broadcast %58 : vector<8x1xf32> to vector<8x8xf32>
    %60 = arith.subf %56, %59 : vector<8x8xf32>
    %61 = math.exp %60 : vector<8x8xf32>
    %cst_32 = arith.constant dense<0.000000e+00> : vector<8xf32>
    %62 = vector.multi_reduction <add>, %61, %cst_32 [1] : vector<8x8xf32> to vector<8xf32>
    %63 = vector.shape_cast %62 : vector<8xf32> to vector<8x1xf32>
    %64 = vector.broadcast %63 : vector<8x1xf32> to vector<8x8xf32>
    %65 = arith.divf %61, %64 : vector<8x8xf32>
    %cst_33 = arith.constant dense<0.000000e+00> : vector<8x8xf32>
    %66 = tpu.matmul %65, %53, %cst_33 {dimension_numbers = #tpu.dot_dimension_numbers<[1], [0], [0], [1], [0, 0, 1, 1], [], []>} : vector<8x8xf32>, vector<8x8xf32>, vector<8x8xf32> -> vector<8x8xf32>
    %67 = vector.extract_strided_slice %8 {offsets = [0, 24], sizes = [8, 8], strides = [1, 1]} : vector<8x32xf32> to vector<8x8xf32>
    %68 = vector.extract_strided_slice %13 {offsets = [0, 24], sizes = [8, 8], strides = [1, 1]} : vector<8x32xf32> to vector<8x8xf32>
    %69 = vector.extract_strided_slice %18 {offsets = [0, 24], sizes = [8, 8], strides = [1, 1]} : vector<8x32xf32> to vector<8x8xf32>
    %cst_34 = arith.constant dense<0.000000e+00> : vector<8x8xf32>
    %70 = tpu.matmul %67, %68, %cst_34 {dimension_numbers = #tpu.dot_dimension_numbers<[1], [1], [0], [0], [0, 0, 1, 0], [], []>} : vector<8x8xf32>, vector<8x8xf32>, vector<8x8xf32> -> vector<8x8xf32>
    %cst_35 = arith.constant 0.353553385 : f32
    %71 = vector.broadcast %cst_35 : f32 to vector<8x8xf32>
    %72 = arith.mulf %70, %71 : vector<8x8xf32>
    %cst_36 = arith.constant dense<0xFF800000> : vector<8xf32>
    %73 = vector.multi_reduction <maximumf>, %72, %cst_36 [1] : vector<8x8xf32> to vector<8xf32>
    %74 = vector.shape_cast %73 : vector<8xf32> to vector<8x1xf32>
    %75 = vector.broadcast %74 : vector<8x1xf32> to vector<8x8xf32>
    %76 = arith.subf %72, %75 : vector<8x8xf32>
    %77 = math.exp %76 : vector<8x8xf32>
    %cst_37 = arith.constant dense<0.000000e+00> : vector<8xf32>
    %78 = vector.multi_reduction <add>, %77, %cst_37 [1] : vector<8x8xf32> to vector<8xf32>
    %79 = vector.shape_cast %78 : vector<8xf32> to vector<8x1xf32>
    %80 = vector.broadcast %79 : vector<8x1xf32> to vector<8x8xf32>
    %81 = arith.divf %77, %80 : vector<8x8xf32>
    %cst_38 = arith.constant dense<0.000000e+00> : vector<8x8xf32>
    %82 = tpu.matmul %81, %69, %cst_38 {dimension_numbers = #tpu.dot_dimension_numbers<[1], [0], [0], [1], [0, 0, 1, 1], [], []>} : vector<8x8xf32>, vector<8x8xf32>, vector<8x8xf32> -> vector<8x8xf32>
    %83 = tpu.concatenate %34, %50, %66, %82 in 1 : vector<8x8xf32>, vector<8x8xf32>, vector<8x8xf32>, vector<8x8xf32> -> vector<8x32xf32>
    %c0_39 = arith.constant 0 : index
    %c0_40 = arith.constant 0 : index
    %84 = vector.load %arg9[%c0_39, %c0_40] : memref<32x32xf32, #tpu.memory_space<vmem>>, vector<32x32xf32>
    %cst_41 = arith.constant dense<0.000000e+00> : vector<8x32xf32>
    %85 = tpu.matmul %83, %84, %cst_41 {dimension_numbers = #tpu.dot_dimension_numbers<[1], [0], [0], [1], [0, 0, 1, 1], [], []>} : vector<8x32xf32>, vector<32x32xf32>, vector<8x32xf32> -> vector<8x32xf32>
    %c0_42 = arith.constant 0 : index
    %c0_43 = arith.constant 0 : index
    %86 = vector.load %arg10[%c0_42, %c0_43] : memref<1x32xf32, #tpu.memory_space<vmem>>, vector<1x32xf32>
    %87 = vector.broadcast %86 : vector<1x32xf32> to vector<8x32xf32>
    %88 = arith.addf %85, %87 : vector<8x32xf32>
    %89 = arith.addf %1, %88 : vector<8x32xf32>
    %c0_44 = arith.constant 0 : index
    %c0_45 = arith.constant 0 : index
    %90 = vector.load %arg11[%c0_44, %c0_45] : memref<1x32xf32, #tpu.memory_space<vmem>>, vector<1x32xf32>
    %c0_46 = arith.constant 0 : index
    %c0_47 = arith.constant 0 : index
    %91 = vector.load %arg12[%c0_46, %c0_47] : memref<1x32xf32, #tpu.memory_space<vmem>>, vector<1x32xf32>
    %cst_48 = arith.constant dense<0.000000e+00> : vector<8xf32>
    %92 = vector.multi_reduction <add>, %89, %cst_48 [1] : vector<8x32xf32> to vector<8xf32>
    %93 = vector.shape_cast %92 : vector<8xf32> to vector<8x1xf32>
    %cst_49 = arith.constant 3.200000e+01 : f32
    %94 = vector.broadcast %cst_49 : f32 to vector<8x1xf32>
    %95 = arith.divf %93, %94 : vector<8x1xf32>
    %96 = vector.broadcast %95 : vector<8x1xf32> to vector<8x32xf32>
    %97 = arith.subf %89, %96 : vector<8x32xf32>
    %98 = arith.mulf %97, %97 : vector<8x32xf32>
    %cst_50 = arith.constant dense<0.000000e+00> : vector<8xf32>
    %99 = vector.multi_reduction <add>, %98, %cst_50 [1] : vector<8x32xf32> to vector<8xf32>
    %100 = vector.shape_cast %99 : vector<8xf32> to vector<8x1xf32>
    %cst_51 = arith.constant 3.200000e+01 : f32
    %101 = vector.broadcast %cst_51 : f32 to vector<8x1xf32>
    %102 = arith.divf %100, %101 : vector<8x1xf32>
    %103 = vector.broadcast %95 : vector<8x1xf32> to vector<8x32xf32>
    %104 = arith.subf %89, %103 : vector<8x32xf32>
    %cst_52 = arith.constant 9.99999974E-6 : f32
    %105 = vector.broadcast %cst_52 : f32 to vector<8x1xf32>
    %106 = arith.addf %102, %105 : vector<8x1xf32>
    %107 = math.rsqrt %106 : vector<8x1xf32>
    %108 = vector.broadcast %107 : vector<8x1xf32> to vector<8x32xf32>
    %109 = arith.mulf %104, %108 : vector<8x32xf32>
    %110 = vector.broadcast %90 : vector<1x32xf32> to vector<8x32xf32>
    %111 = arith.mulf %109, %110 : vector<8x32xf32>
    %112 = vector.broadcast %91 : vector<1x32xf32> to vector<8x32xf32>
    %113 = arith.addf %111, %112 : vector<8x32xf32>
    %c0_53 = arith.constant 0 : index
    %c0_54 = arith.constant 0 : index
    %114 = vector.load %arg13[%c0_53, %c0_54] : memref<32x32xf32, #tpu.memory_space<vmem>>, vector<32x32xf32>
    %cst_55 = arith.constant dense<0.000000e+00> : vector<8x32xf32>
    %115 = tpu.matmul %113, %114, %cst_55 {dimension_numbers = #tpu.dot_dimension_numbers<[1], [0], [0], [1], [0, 0, 1, 1], [], []>} : vector<8x32xf32>, vector<32x32xf32>, vector<8x32xf32> -> vector<8x32xf32>
    %c0_56 = arith.constant 0 : index
    %c0_57 = arith.constant 0 : index
    %116 = vector.load %arg14[%c0_56, %c0_57] : memref<1x32xf32, #tpu.memory_space<vmem>>, vector<1x32xf32>
    %117 = vector.broadcast %116 : vector<1x32xf32> to vector<8x32xf32>
    %118 = arith.addf %115, %117 : vector<8x32xf32>
    %c0_58 = arith.constant 0 : index
    %c0_59 = arith.constant 0 : index
    %119 = vector.load %arg15[%c0_58, %c0_59] : memref<32x32xf32, #tpu.memory_space<vmem>>, vector<32x32xf32>
    %cst_60 = arith.constant dense<0.000000e+00> : vector<8x32xf32>
    %120 = tpu.matmul %3, %119, %cst_60 {dimension_numbers = #tpu.dot_dimension_numbers<[1], [0], [0], [1], [0, 0, 1, 1], [], []>} : vector<8x32xf32>, vector<32x32xf32>, vector<8x32xf32> -> vector<8x32xf32>
    %c0_61 = arith.constant 0 : index
    %c0_62 = arith.constant 0 : index
    %121 = vector.load %arg16[%c0_61, %c0_62] : memref<1x32xf32, #tpu.memory_space<vmem>>, vector<1x32xf32>
    %122 = vector.broadcast %121 : vector<1x32xf32> to vector<8x32xf32>
    %123 = arith.addf %120, %122 : vector<8x32xf32>
    %c0_63 = arith.constant 0 : index
    %c0_64 = arith.constant 0 : index
    %124 = vector.load %arg17[%c0_63, %c0_64] : memref<32x32xf32, #tpu.memory_space<vmem>>, vector<32x32xf32>
    %cst_65 = arith.constant dense<0.000000e+00> : vector<8x32xf32>
    %125 = tpu.matmul %3, %124, %cst_65 {dimension_numbers = #tpu.dot_dimension_numbers<[1], [0], [0], [1], [0, 0, 1, 1], [], []>} : vector<8x32xf32>, vector<32x32xf32>, vector<8x32xf32> -> vector<8x32xf32>
    %c0_66 = arith.constant 0 : index
    %c0_67 = arith.constant 0 : index
    %126 = vector.load %arg18[%c0_66, %c0_67] : memref<1x32xf32, #tpu.memory_space<vmem>>, vector<1x32xf32>
    %127 = vector.broadcast %126 : vector<1x32xf32> to vector<8x32xf32>
    %128 = arith.addf %125, %127 : vector<8x32xf32>
    %129 = vector.extract_strided_slice %118 {offsets = [0, 0], sizes = [8, 8], strides = [1, 1]} : vector<8x32xf32> to vector<8x8xf32>
    %130 = vector.extract_strided_slice %123 {offsets = [0, 0], sizes = [8, 8], strides = [1, 1]} : vector<8x32xf32> to vector<8x8xf32>
    %131 = vector.extract_strided_slice %128 {offsets = [0, 0], sizes = [8, 8], strides = [1, 1]} : vector<8x32xf32> to vector<8x8xf32>
    %cst_68 = arith.constant dense<0.000000e+00> : vector<8x8xf32>
    %132 = tpu.matmul %129, %130, %cst_68 {dimension_numbers = #tpu.dot_dimension_numbers<[1], [1], [0], [0], [0, 0, 1, 0], [], []>} : vector<8x8xf32>, vector<8x8xf32>, vector<8x8xf32> -> vector<8x8xf32>
    %cst_69 = arith.constant 0.353553385 : f32
    %133 = vector.broadcast %cst_69 : f32 to vector<8x8xf32>
    %134 = arith.mulf %132, %133 : vector<8x8xf32>
    %cst_70 = arith.constant dense<0xFF800000> : vector<8xf32>
    %135 = vector.multi_reduction <maximumf>, %134, %cst_70 [1] : vector<8x8xf32> to vector<8xf32>
    %136 = vector.shape_cast %135 : vector<8xf32> to vector<8x1xf32>
    %137 = vector.broadcast %136 : vector<8x1xf32> to vector<8x8xf32>
    %138 = arith.subf %134, %137 : vector<8x8xf32>
    %139 = math.exp %138 : vector<8x8xf32>
    %cst_71 = arith.constant dense<0.000000e+00> : vector<8xf32>
    %140 = vector.multi_reduction <add>, %139, %cst_71 [1] : vector<8x8xf32> to vector<8xf32>
    %141 = vector.shape_cast %140 : vector<8xf32> to vector<8x1xf32>
    %142 = vector.broadcast %141 : vector<8x1xf32> to vector<8x8xf32>
    %143 = arith.divf %139, %142 : vector<8x8xf32>
    %cst_72 = arith.constant dense<0.000000e+00> : vector<8x8xf32>
    %144 = tpu.matmul %143, %131, %cst_72 {dimension_numbers = #tpu.dot_dimension_numbers<[1], [0], [0], [1], [0, 0, 1, 1], [], []>} : vector<8x8xf32>, vector<8x8xf32>, vector<8x8xf32> -> vector<8x8xf32>
    %145 = vector.extract_strided_slice %118 {offsets = [0, 8], sizes = [8, 8], strides = [1, 1]} : vector<8x32xf32> to vector<8x8xf32>
    %146 = vector.extract_strided_slice %123 {offsets = [0, 8], sizes = [8, 8], strides = [1, 1]} : vector<8x32xf32> to vector<8x8xf32>
    %147 = vector.extract_strided_slice %128 {offsets = [0, 8], sizes = [8, 8], strides = [1, 1]} : vector<8x32xf32> to vector<8x8xf32>
    %cst_73 = arith.constant dense<0.000000e+00> : vector<8x8xf32>
    %148 = tpu.matmul %145, %146, %cst_73 {dimension_numbers = #tpu.dot_dimension_numbers<[1], [1], [0], [0], [0, 0, 1, 0], [], []>} : vector<8x8xf32>, vector<8x8xf32>, vector<8x8xf32> -> vector<8x8xf32>
    %cst_74 = arith.constant 0.353553385 : f32
    %149 = vector.broadcast %cst_74 : f32 to vector<8x8xf32>
    %150 = arith.mulf %148, %149 : vector<8x8xf32>
    %cst_75 = arith.constant dense<0xFF800000> : vector<8xf32>
    %151 = vector.multi_reduction <maximumf>, %150, %cst_75 [1] : vector<8x8xf32> to vector<8xf32>
    %152 = vector.shape_cast %151 : vector<8xf32> to vector<8x1xf32>
    %153 = vector.broadcast %152 : vector<8x1xf32> to vector<8x8xf32>
    %154 = arith.subf %150, %153 : vector<8x8xf32>
    %155 = math.exp %154 : vector<8x8xf32>
    %cst_76 = arith.constant dense<0.000000e+00> : vector<8xf32>
    %156 = vector.multi_reduction <add>, %155, %cst_76 [1] : vector<8x8xf32> to vector<8xf32>
    %157 = vector.shape_cast %156 : vector<8xf32> to vector<8x1xf32>
    %158 = vector.broadcast %157 : vector<8x1xf32> to vector<8x8xf32>
    %159 = arith.divf %155, %158 : vector<8x8xf32>
    %cst_77 = arith.constant dense<0.000000e+00> : vector<8x8xf32>
    %160 = tpu.matmul %159, %147, %cst_77 {dimension_numbers = #tpu.dot_dimension_numbers<[1], [0], [0], [1], [0, 0, 1, 1], [], []>} : vector<8x8xf32>, vector<8x8xf32>, vector<8x8xf32> -> vector<8x8xf32>
    %161 = vector.extract_strided_slice %118 {offsets = [0, 16], sizes = [8, 8], strides = [1, 1]} : vector<8x32xf32> to vector<8x8xf32>
    %162 = vector.extract_strided_slice %123 {offsets = [0, 16], sizes = [8, 8], strides = [1, 1]} : vector<8x32xf32> to vector<8x8xf32>
    %163 = vector.extract_strided_slice %128 {offsets = [0, 16], sizes = [8, 8], strides = [1, 1]} : vector<8x32xf32> to vector<8x8xf32>
    %cst_78 = arith.constant dense<0.000000e+00> : vector<8x8xf32>
    %164 = tpu.matmul %161, %162, %cst_78 {dimension_numbers = #tpu.dot_dimension_numbers<[1], [1], [0], [0], [0, 0, 1, 0], [], []>} : vector<8x8xf32>, vector<8x8xf32>, vector<8x8xf32> -> vector<8x8xf32>
    %cst_79 = arith.constant 0.353553385 : f32
    %165 = vector.broadcast %cst_79 : f32 to vector<8x8xf32>
    %166 = arith.mulf %164, %165 : vector<8x8xf32>
    %cst_80 = arith.constant dense<0xFF800000> : vector<8xf32>
    %167 = vector.multi_reduction <maximumf>, %166, %cst_80 [1] : vector<8x8xf32> to vector<8xf32>
    %168 = vector.shape_cast %167 : vector<8xf32> to vector<8x1xf32>
    %169 = vector.broadcast %168 : vector<8x1xf32> to vector<8x8xf32>
    %170 = arith.subf %166, %169 : vector<8x8xf32>
    %171 = math.exp %170 : vector<8x8xf32>
    %cst_81 = arith.constant dense<0.000000e+00> : vector<8xf32>
    %172 = vector.multi_reduction <add>, %171, %cst_81 [1] : vector<8x8xf32> to vector<8xf32>
    %173 = vector.shape_cast %172 : vector<8xf32> to vector<8x1xf32>
    %174 = vector.broadcast %173 : vector<8x1xf32> to vector<8x8xf32>
    %175 = arith.divf %171, %174 : vector<8x8xf32>
    %cst_82 = arith.constant dense<0.000000e+00> : vector<8x8xf32>
    %176 = tpu.matmul %175, %163, %cst_82 {dimension_numbers = #tpu.dot_dimension_numbers<[1], [0], [0], [1], [0, 0, 1, 1], [], []>} : vector<8x8xf32>, vector<8x8xf32>, vector<8x8xf32> -> vector<8x8xf32>
    %177 = vector.extract_strided_slice %118 {offsets = [0, 24], sizes = [8, 8], strides = [1, 1]} : vector<8x32xf32> to vector<8x8xf32>
    %178 = vector.extract_strided_slice %123 {offsets = [0, 24], sizes = [8, 8], strides = [1, 1]} : vector<8x32xf32> to vector<8x8xf32>
    %179 = vector.extract_strided_slice %128 {offsets = [0, 24], sizes = [8, 8], strides = [1, 1]} : vector<8x32xf32> to vector<8x8xf32>
    %cst_83 = arith.constant dense<0.000000e+00> : vector<8x8xf32>
    %180 = tpu.matmul %177, %178, %cst_83 {dimension_numbers = #tpu.dot_dimension_numbers<[1], [1], [0], [0], [0, 0, 1, 0], [], []>} : vector<8x8xf32>, vector<8x8xf32>, vector<8x8xf32> -> vector<8x8xf32>
    %cst_84 = arith.constant 0.353553385 : f32
    %181 = vector.broadcast %cst_84 : f32 to vector<8x8xf32>
    %182 = arith.mulf %180, %181 : vector<8x8xf32>
    %cst_85 = arith.constant dense<0xFF800000> : vector<8xf32>
    %183 = vector.multi_reduction <maximumf>, %182, %cst_85 [1] : vector<8x8xf32> to vector<8xf32>
    %184 = vector.shape_cast %183 : vector<8xf32> to vector<8x1xf32>
    %185 = vector.broadcast %184 : vector<8x1xf32> to vector<8x8xf32>
    %186 = arith.subf %182, %185 : vector<8x8xf32>
    %187 = math.exp %186 : vector<8x8xf32>
    %cst_86 = arith.constant dense<0.000000e+00> : vector<8xf32>
    %188 = vector.multi_reduction <add>, %187, %cst_86 [1] : vector<8x8xf32> to vector<8xf32>
    %189 = vector.shape_cast %188 : vector<8xf32> to vector<8x1xf32>
    %190 = vector.broadcast %189 : vector<8x1xf32> to vector<8x8xf32>
    %191 = arith.divf %187, %190 : vector<8x8xf32>
    %cst_87 = arith.constant dense<0.000000e+00> : vector<8x8xf32>
    %192 = tpu.matmul %191, %179, %cst_87 {dimension_numbers = #tpu.dot_dimension_numbers<[1], [0], [0], [1], [0, 0, 1, 1], [], []>} : vector<8x8xf32>, vector<8x8xf32>, vector<8x8xf32> -> vector<8x8xf32>
    %193 = tpu.concatenate %144, %160, %176, %192 in 1 : vector<8x8xf32>, vector<8x8xf32>, vector<8x8xf32>, vector<8x8xf32> -> vector<8x32xf32>
    %c0_88 = arith.constant 0 : index
    %c0_89 = arith.constant 0 : index
    %194 = vector.load %arg19[%c0_88, %c0_89] : memref<32x32xf32, #tpu.memory_space<vmem>>, vector<32x32xf32>
    %cst_90 = arith.constant dense<0.000000e+00> : vector<8x32xf32>
    %195 = tpu.matmul %193, %194, %cst_90 {dimension_numbers = #tpu.dot_dimension_numbers<[1], [0], [0], [1], [0, 0, 1, 1], [], []>} : vector<8x32xf32>, vector<32x32xf32>, vector<8x32xf32> -> vector<8x32xf32>
    %c0_91 = arith.constant 0 : index
    %c0_92 = arith.constant 0 : index
    %196 = vector.load %arg20[%c0_91, %c0_92] : memref<1x32xf32, #tpu.memory_space<vmem>>, vector<1x32xf32>
    %197 = vector.broadcast %196 : vector<1x32xf32> to vector<8x32xf32>
    %198 = arith.addf %195, %197 : vector<8x32xf32>
    %199 = arith.addf %113, %198 : vector<8x32xf32>
    %c0_93 = arith.constant 0 : index
    %c0_94 = arith.constant 0 : index
    %200 = vector.load %arg21[%c0_93, %c0_94] : memref<1x32xf32, #tpu.memory_space<vmem>>, vector<1x32xf32>
    %c0_95 = arith.constant 0 : index
    %c0_96 = arith.constant 0 : index
    %201 = vector.load %arg22[%c0_95, %c0_96] : memref<1x32xf32, #tpu.memory_space<vmem>>, vector<1x32xf32>
    %cst_97 = arith.constant dense<0.000000e+00> : vector<8xf32>
    %202 = vector.multi_reduction <add>, %199, %cst_97 [1] : vector<8x32xf32> to vector<8xf32>
    %203 = vector.shape_cast %202 : vector<8xf32> to vector<8x1xf32>
    %cst_98 = arith.constant 3.200000e+01 : f32
    %204 = vector.broadcast %cst_98 : f32 to vector<8x1xf32>
    %205 = arith.divf %203, %204 : vector<8x1xf32>
    %206 = vector.broadcast %205 : vector<8x1xf32> to vector<8x32xf32>
    %207 = arith.subf %199, %206 : vector<8x32xf32>
    %208 = arith.mulf %207, %207 : vector<8x32xf32>
    %cst_99 = arith.constant dense<0.000000e+00> : vector<8xf32>
    %209 = vector.multi_reduction <add>, %208, %cst_99 [1] : vector<8x32xf32> to vector<8xf32>
    %210 = vector.shape_cast %209 : vector<8xf32> to vector<8x1xf32>
    %cst_100 = arith.constant 3.200000e+01 : f32
    %211 = vector.broadcast %cst_100 : f32 to vector<8x1xf32>
    %212 = arith.divf %210, %211 : vector<8x1xf32>
    %213 = vector.broadcast %205 : vector<8x1xf32> to vector<8x32xf32>
    %214 = arith.subf %199, %213 : vector<8x32xf32>
    %cst_101 = arith.constant 9.99999974E-6 : f32
    %215 = vector.broadcast %cst_101 : f32 to vector<8x1xf32>
    %216 = arith.addf %212, %215 : vector<8x1xf32>
    %217 = math.rsqrt %216 : vector<8x1xf32>
    %218 = vector.broadcast %217 : vector<8x1xf32> to vector<8x32xf32>
    %219 = arith.mulf %214, %218 : vector<8x32xf32>
    %220 = vector.broadcast %200 : vector<1x32xf32> to vector<8x32xf32>
    %221 = arith.mulf %219, %220 : vector<8x32xf32>
    %222 = vector.broadcast %201 : vector<1x32xf32> to vector<8x32xf32>
    %223 = arith.addf %221, %222 : vector<8x32xf32>
    %c0_102 = arith.constant 0 : index
    %c0_103 = arith.constant 0 : index
    %224 = vector.load %arg23[%c0_102, %c0_103] : memref<32x64xf32, #tpu.memory_space<vmem>>, vector<32x64xf32>
    %cst_104 = arith.constant dense<0.000000e+00> : vector<8x64xf32>
    %225 = tpu.matmul %223, %224, %cst_104 {dimension_numbers = #tpu.dot_dimension_numbers<[1], [0], [0], [1], [0, 0, 1, 1], [], []>} : vector<8x32xf32>, vector<32x64xf32>, vector<8x64xf32> -> vector<8x64xf32>
    %c0_105 = arith.constant 0 : index
    %c0_106 = arith.constant 0 : index
    %226 = vector.load %arg24[%c0_105, %c0_106] : memref<1x64xf32, #tpu.memory_space<vmem>>, vector<1x64xf32>
    %227 = vector.broadcast %226 : vector<1x64xf32> to vector<8x64xf32>
    %228 = arith.addf %225, %227 : vector<8x64xf32>
    %cst_107 = arith.constant 0.000000e+00 : f32
    %229 = vector.broadcast %cst_107 : f32 to vector<8x64xf32>
    %230 = arith.maximumf %228, %229 : vector<8x64xf32>
    %c0_108 = arith.constant 0 : index
    %c0_109 = arith.constant 0 : index
    %231 = vector.load %arg25[%c0_108, %c0_109] : memref<64x32xf32, #tpu.memory_space<vmem>>, vector<64x32xf32>
    %cst_110 = arith.constant dense<0.000000e+00> : vector<8x32xf32>
    %232 = tpu.matmul %230, %231, %cst_110 {dimension_numbers = #tpu.dot_dimension_numbers<[1], [0], [0], [1], [0, 0, 1, 1], [], []>} : vector<8x64xf32>, vector<64x32xf32>, vector<8x32xf32> -> vector<8x32xf32>
    %c0_111 = arith.constant 0 : index
    %c0_112 = arith.constant 0 : index
    %233 = vector.load %arg26[%c0_111, %c0_112] : memref<1x32xf32, #tpu.memory_space<vmem>>, vector<1x32xf32>
    %234 = vector.broadcast %233 : vector<1x32xf32> to vector<8x32xf32>
    %235 = arith.addf %232, %234 : vector<8x32xf32>
    %236 = arith.addf %223, %235 : vector<8x32xf32>
    %c0_113 = arith.constant 0 : index
    %c0_114 = arith.constant 0 : index
    %237 = vector.load %arg27[%c0_113, %c0_114] : memref<1x32xf32, #tpu.memory_space<vmem>>, vector<1x32xf32>
    %c0_115 = arith.constant 0 : index
    %c0_116 = arith.constant 0 : index
    %238 = vector.load %arg28[%c0_115, %c0_116] : memref<1x32xf32, #tpu.memory_space<vmem>>, vector<1x32xf32>
    %cst_117 = arith.constant dense<0.000000e+00> : vector<8xf32>
    %239 = vector.multi_reduction <add>, %236, %cst_117 [1] : vector<8x32xf32> to vector<8xf32>
    %240 = vector.shape_cast %239 : vector<8xf32> to vector<8x1xf32>
    %cst_118 = arith.constant 3.200000e+01 : f32
    %241 = vector.broadcast %cst_118 : f32 to vector<8x1xf32>
    %242 = arith.divf %240, %241 : vector<8x1xf32>
    %243 = vector.broadcast %242 : vector<8x1xf32> to vector<8x32xf32>
    %244 = arith.subf %236, %243 : vector<8x32xf32>
    %245 = arith.mulf %244, %244 : vector<8x32xf32>
    %cst_119 = arith.constant dense<0.000000e+00> : vector<8xf32>
    %246 = vector.multi_reduction <add>, %245, %cst_119 [1] : vector<8x32xf32> to vector<8xf32>
    %247 = vector.shape_cast %246 : vector<8xf32> to vector<8x1xf32>
    %cst_120 = arith.constant 3.200000e+01 : f32
    %248 = vector.broadcast %cst_120 : f32 to vector<8x1xf32>
    %249 = arith.divf %247, %248 : vector<8x1xf32>
    %250 = vector.broadcast %242 : vector<8x1xf32> to vector<8x32xf32>
    %251 = arith.subf %236, %250 : vector<8x32xf32>
    %cst_121 = arith.constant 9.99999974E-6 : f32
    %252 = vector.broadcast %cst_121 : f32 to vector<8x1xf32>
    %253 = arith.addf %249, %252 : vector<8x1xf32>
    %254 = math.rsqrt %253 : vector<8x1xf32>
    %255 = vector.broadcast %254 : vector<8x1xf32> to vector<8x32xf32>
    %256 = arith.mulf %251, %255 : vector<8x32xf32>
    %257 = vector.broadcast %237 : vector<1x32xf32> to vector<8x32xf32>
    %258 = arith.mulf %256, %257 : vector<8x32xf32>
    %259 = vector.broadcast %238 : vector<1x32xf32> to vector<8x32xf32>
    %260 = arith.addf %258, %259 : vector<8x32xf32>
    %c0_122 = arith.constant 0 : index
    %c0_123 = arith.constant 0 : index
    %c0_124 = arith.constant 0 : index
    %261 = vector.load %arg29[%c0_122, %c0_123, %c0_124] : memref<1x8x32xf32, #tpu.memory_space<vmem>>, vector<1x8x32xf32>
    %262 = vector.shape_cast %261 : vector<1x8x32xf32> to vector<8x32xf32>
    %263 = vector.shape_cast %260 : vector<8x32xf32> to vector<1x8x32xf32>
    tpu.vector_store %arg29[%c0_122, %c0_123, %c0_124], %263 {strides = array<i32>} : memref<1x8x32xf32, #tpu.memory_space<vmem>>, vector<1x8x32xf32>,
    return
  }
  func.func @transform_0(%arg0: i32) -> (i32, i32, i32) {
    %c0_i32 = arith.constant 0 : i32
    %c0_i32_0 = arith.constant 0 : i32
    %c0_i32_1 = arith.constant 0 : i32
    return %arg0, %c0_i32, %c0_i32_0 : i32, i32, i32
  }
  func.func @transform_1(%arg0: i32) -> (i32, i32, i32) {
    %c0_i32 = arith.constant 0 : i32
    %c0_i32_0 = arith.constant 0 : i32
    %c0_i32_1 = arith.constant 0 : i32
    return %arg0, %c0_i32, %c0_i32_0 : i32, i32, i32
  }
  func.func @transform_2(%arg0: i32) -> (i32, i32) {
    %c0_i32 = arith.constant 0 : i32
    %c0_i32_0 = arith.constant 0 : i32
    %c0_i32_1 = arith.constant 0 : i32
    return %c0_i32, %c0_i32_0 : i32, i32
  }
  func.func @transform_3(%arg0: i32) -> (i32, i32) {
    %c0_i32 = arith.constant 0 : i32
    %c0_i32_0 = arith.constant 0 : i32
    %c0_i32_1 = arith.constant 0 : i32
    return %c0_i32, %c0_i32_0 : i32, i32
  }
  func.func @transform_4(%arg0: i32) -> (i32, i32) {
    %c0_i32 = arith.constant 0 : i32
    %c0_i32_0 = arith.constant 0 : i32
    %c0_i32_1 = arith.constant 0 : i32
    return %c0_i32, %c0_i32_0 : i32, i32
  }
  func.func @transform_5(%arg0: i32) -> (i32, i32) {
    %c0_i32 = arith.constant 0 : i32
    %c0_i32_0 = arith.constant 0 : i32
    %c0_i32_1 = arith.constant 0 : i32
    return %c0_i32, %c0_i32_0 : i32, i32
  }
  func.func @transform_6(%arg0: i32) -> (i32, i32) {
    %c0_i32 = arith.constant 0 : i32
    %c0_i32_0 = arith.constant 0 : i32
    %c0_i32_1 = arith.constant 0 : i32
    return %c0_i32, %c0_i32_0 : i32, i32
  }
  func.func @transform_7(%arg0: i32) -> (i32, i32) {
    %c0_i32 = arith.constant 0 : i32
    %c0_i32_0 = arith.constant 0 : i32
    %c0_i32_1 = arith.constant 0 : i32
    return %c0_i32, %c0_i32_0 : i32, i32
  }
  func.func @transform_8(%arg0: i32) -> (i32, i32) {
    %c0_i32 = arith.constant 0 : i32
    %c0_i32_0 = arith.constant 0 : i32
    %c0_i32_1 = arith.constant 0 : i32
    return %c0_i32, %c0_i32_0 : i32, i32
  }
  func.func @transform_9(%arg0: i32) -> (i32, i32) {
    %c0_i32 = arith.constant 0 : i32
    %c0_i32_0 = arith.constant 0 : i32
    %c0_i32_1 = arith.constant 0 : i32
    return %c0_i32, %c0_i32_0 : i32, i32
  }
  func.func @transform_10(%arg0: i32) -> (i32, i32) {
    %c0_i32 = arith.constant 0 : i32
    %c0_i32_0 = arith.constant 0 : i32
    %c0_i32_1 = arith.constant 0 : i32
    return %c0_i32, %c0_i32_0 : i32, i32
  }
  func.func @transform_11(%arg0: i32) -> (i32, i32) {
    %c0_i32 = arith.constant 0 : i32
    %c0_i32_0 = arith.constant 0 : i32
    %c0_i32_1 = arith.constant 0 : i32
    return %c0_i32, %c0_i32_0 : i32, i32
  }
  func.func @transform_12(%arg0: i32) -> (i32, i32) {
    %c0_i32 = arith.constant 0 : i32
    %c0_i32_0 = arith.constant 0 : i32
    %c0_i32_1 = arith.constant 0 : i32
    return %c0_i32, %c0_i32_0 : i32, i32
  }
  func.func @transform_13(%arg0: i32) -> (i32, i32) {
    %c0_i32 = arith.constant 0 : i32
    %c0_i32_0 = arith.constant 0 : i32
    %c0_i32_1 = arith.constant 0 : i32
    return %c0_i32, %c0_i32_0 : i32, i32
  }
  func.func @transform_14(%arg0: i32) -> (i32, i32) {
    %c0_i32 = arith.constant 0 : i32
    %c0_i32_0 = arith.constant 0 : i32
    %c0_i32_1 = arith.constant 0 : i32
    return %c0_i32, %c0_i32_0 : i32, i32
  }
  func.func @transform_15(%arg0: i32) -> (i32, i32) {
    %c0_i32 = arith.constant 0 : i32
    %c0_i32_0 = arith.constant 0 : i32
    %c0_i32_1 = arith.constant 0 : i32
    return %c0_i32, %c0_i32_0 : i32, i32
  }
  func.func @transform_16(%arg0: i32) -> (i32, i32) {
    %c0_i32 = arith.constant 0 : i32
    %c0_i32_0 = arith.constant 0 : i32
    %c0_i32_1 = arith.constant 0 : i32
    return %c0_i32, %c0_i32_0 : i32, i32
  }
  func.func @transform_17(%arg0: i32) -> (i32, i32) {
    %c0_i32 = arith.constant 0 : i32
    %c0_i32_0 = arith.constant 0 : i32
    %c0_i32_1 = arith.constant 0 : i32
    return %c0_i32, %c0_i32_0 : i32, i32
  }
  func.func @transform_18(%arg0: i32) -> (i32, i32) {
    %c0_i32 = arith.constant 0 : i32
    %c0_i32_0 = arith.constant 0 : i32
    %c0_i32_1 = arith.constant 0 : i32
    return %c0_i32, %c0_i32_0 : i32, i32
  }
  func.func @transform_19(%arg0: i32) -> (i32, i32) {
    %c0_i32 = arith.constant 0 : i32
    %c0_i32_0 = arith.constant 0 : i32
    %c0_i32_1 = arith.constant 0 : i32
    return %c0_i32, %c0_i32_0 : i32, i32
  }
  func.func @transform_20(%arg0: i32) -> (i32, i32) {
    %c0_i32 = arith.constant 0 : i32
    %c0_i32_0 = arith.constant 0 : i32
    %c0_i32_1 = arith.constant 0 : i32
    return %c0_i32, %c0_i32_0 : i32, i32
  }
  func.func @transform_21(%arg0: i32) -> (i32, i32) {
    %c0_i32 = arith.constant 0 : i32
    %c0_i32_0 = arith.constant 0 : i32
    %c0_i32_1 = arith.constant 0 : i32
    return %c0_i32, %c0_i32_0 : i32, i32
  }
  func.func @transform_22(%arg0: i32) -> (i32, i32) {
    %c0_i32 = arith.constant 0 : i32
    %c0_i32_0 = arith.constant 0 : i32
    %c0_i32_1 = arith.constant 0 : i32
    return %c0_i32, %c0_i32_0 : i32, i32
  }
  func.func @transform_23(%arg0: i32) -> (i32, i32) {
    %c0_i32 = arith.constant 0 : i32
    %c0_i32_0 = arith.constant 0 : i32
    %c0_i32_1 = arith.constant 0 : i32
    return %c0_i32, %c0_i32_0 : i32, i32
  }
  func.func @transform_24(%arg0: i32) -> (i32, i32) {
    %c0_i32 = arith.constant 0 : i32
    %c0_i32_0 = arith.constant 0 : i32
    %c0_i32_1 = arith.constant 0 : i32
    return %c0_i32, %c0_i32_0 : i32, i32
  }
  func.func @transform_25(%arg0: i32) -> (i32, i32) {
    %c0_i32 = arith.constant 0 : i32
    %c0_i32_0 = arith.constant 0 : i32
    %c0_i32_1 = arith.constant 0 : i32
    return %c0_i32, %c0_i32_0 : i32, i32
  }
  func.func @transform_26(%arg0: i32) -> (i32, i32) {
    %c0_i32 = arith.constant 0 : i32
    %c0_i32_0 = arith.constant 0 : i32
    %c0_i32_1 = arith.constant 0 : i32
    return %c0_i32, %c0_i32_0 : i32, i32
  }
  func.func @transform_27(%arg0: i32) -> (i32, i32) {
    %c0_i32 = arith.constant 0 : i32
    %c0_i32_0 = arith.constant 0 : i32
    %c0_i32_1 = arith.constant 0 : i32
    return %c0_i32, %c0_i32_0 : i32, i32
  }
  func.func @transform_28(%arg0: i32) -> (i32, i32, i32) {
    %c0_i32 = arith.constant 0 : i32
    %c0_i32_0 = arith.constant 0 : i32
    %c0_i32_1 = arith.constant 0 : i32
    return %arg0, %c0_i32, %c0_i32_0 : i32, i32, i32
  }
}

</mosaic_0001>

<llo_original>
// kernel: tpu_custom_call.1
$region0: #{tpu_custom_call.1}
  #allocation0 [shape = 'u32[]', space=smem, size = 0x4, offset = 0x4, fixed_abs, tag = 'smem constant byte address 0x4 - core index']
  #allocation1 [shape = 'u32[72,128]{1,0:T(1,128)}', space=vmem, size = 0x9000, scoped, tag = 'internal scratch']
  %s0 = inlined_call_operand.hbm [shape: f32[2,8,32], index: 0, kind: input, shape index: {}]
  %s1 = inlined_call_operand.hbm [shape: f32[2,8,32], index: 1, kind: input, shape index: {}]
  %s2 = inlined_call_operand.vmem [shape: f32[32,32], index: 2, kind: input, shape index: {}]
  %s3 = inlined_call_operand.vmem [shape: f32[1,32], index: 3, kind: input, shape index: {}]
  %s4 = inlined_call_operand.vmem [shape: f32[32,32], index: 4, kind: input, shape index: {}]
  %s5 = inlined_call_operand.vmem [shape: f32[1,32], index: 5, kind: input, shape index: {}]
  %s6 = inlined_call_operand.vmem [shape: f32[32,32], index: 6, kind: input, shape index: {}]
  %s7 = inlined_call_operand.vmem [shape: f32[1,32], index: 7, kind: input, shape index: {}]
  %s8 = inlined_call_operand.hbm [shape: f32[32,32], index: 8, kind: input, shape index: {}]
  %s9 = inlined_call_operand.vmem [shape: f32[1,32], index: 9, kind: input, shape index: {}]
  %s10 = inlined_call_operand.vmem [shape: f32[1,32], index: 10, kind: input, shape index: {}]
  %s11 = inlined_call_operand.vmem [shape: f32[1,32], index: 11, kind: input, shape index: {}]
  %s12 = inlined_call_operand.hbm [shape: f32[32,32], index: 12, kind: input, shape index: {}]
  %s13 = inlined_call_operand.vmem [shape: f32[1,32], index: 13, kind: input, shape index: {}]
  %s14 = inlined_call_operand.hbm [shape: f32[32,32], index: 14, kind: input, shape index: {}]
  %s15 = inlined_call_operand.vmem [shape: f32[1,32], index: 15, kind: input, shape index: {}]
  %s16 = inlined_call_operand.hbm [shape: f32[32,32], index: 16, kind: input, shape index: {}]
  %s17 = inlined_call_operand.vmem [shape: f32[1,32], index: 17, kind: input, shape index: {}]
  %s18 = inlined_call_operand.hbm [shape: f32[32,32], index: 18, kind: input, shape index: {}]
  %s19 = inlined_call_operand.vmem [shape: f32[1,32], index: 19, kind: input, shape index: {}]
  %s20 = inlined_call_operand.vmem [shape: f32[1,32], index: 20, kind: input, shape index: {}]
  %s21 = inlined_call_operand.vmem [shape: f32[1,32], index: 21, kind: input, shape index: {}]
  %s22 = inlined_call_operand.hbm [shape: f32[32,64], index: 22, kind: input, shape index: {}]
  %s23 = inlined_call_operand.vmem [shape: f32[1,64], index: 23, kind: input, shape index: {}]
  %s24 = inlined_call_operand.vmem [shape: f32[64,32], index: 24, kind: input, shape index: {}]
  %s25 = inlined_call_operand.vmem [shape: f32[1,32], index: 25, kind: input, shape index: {}]
  %s26 = inlined_call_operand.vmem [shape: f32[1,32], index: 26, kind: input, shape index: {}]
  %s27 = inlined_call_operand.vmem [shape: f32[1,32], index: 27, kind: input, shape index: {}]
  %s28 = inlined_call_operand.hbm [shape: f32[2,8,32], index: 28, kind: output, shape index: {}]
  %s29 = sld [smem:[#allocation0]]
  $region177: #{tpu_custom_call.1} parent=0
    _
  %s31 = ssub.s32 1, %s29
  %s32 = scalar_select 0, %s31, %s29
  $region1: #{tpu_custom_call.1} parent=0
    #allocation2 [shape = 'u8[8192]{0}', space=vmem, size = 0x2000, scoped, tag = 'input window, operand 0']
    #allocation3 [shape = 's32[2]{0}', space=sflag, size = 0x8, scoped, tag = 'scoped memory for tpu_custom_call.1']
    #allocation4 [shape = 's32[2]{0}', space=sflag, size = 0x8, scoped, tag = 'scoped memory for tpu_custom_call.1']
    #allocation5 [shape = 'u8[8192]{0}', space=vmem, size = 0x2000, scoped, tag = 'input window, operand 1']
    #allocation6 [shape = 's32[2]{0}', space=sflag, size = 0x8, scoped, tag = 'scoped memory for tpu_custom_call.1']
    #allocation7 [shape = 'u8[16384]{0}', space=vmem, size = 0x4000, scoped, tag = 'input window, operand 8, single buffered']
    #allocation8 [shape = 'u8[16384]{0}', space=vmem, size = 0x4000, scoped, tag = 'input window, operand 12, single buffered']
    #allocation9 [shape = 's32[1]{0}', space=sflag, size = 0x4, scoped, tag = 'scoped memory for tpu_custom_call.1']
    #allocation10 [shape = 'u8[16384]{0}', space=vmem, size = 0x4000, scoped, tag = 'input window, operand 14, single buffered']
    #allocation11 [shape = 'u8[16384]{0}', space=vmem, size = 0x4000, scoped, tag = 'input window, operand 16, single buffered']
    #allocation12 [shape = 's32[1]{0}', space=sflag, size = 0x4, scoped, tag = 'scoped memory for tpu_custom_call.1']
    #allocation13 [shape = 'u8[16384]{0}', space=vmem, size = 0x4000, scoped, tag = 'input window, operand 18, single buffered']
    #allocation14 [shape = 'u8[16384]{0}', space=vmem, size = 0x4000, scoped, tag = 'input window, operand 22, single buffered']
    #allocation15 [shape = 's32[1]{0}', space=sflag, size = 0x4, scoped, tag = 'scoped memory for tpu_custom_call.1']
    #allocation16 [shape = 'u8[8192]{0}', space=vmem, size = 0x2000, scoped, tag = 'output window, operand 0']
    %33 = vsyncpa [#allocation3], 0
    %s34 = scalar_lea.sflag [#allocation3], 1
    %35 = vsyncpa %s34, 0
    %36 = vsyncpa [#allocation6], 0
    %s37 = scalar_lea.sflag [#allocation6], 1
    %38 = vsyncpa %s37, 0
    %39 = vsyncpa [#allocation9], 0
    %40 = vsyncpa [#allocation12], 0
    %41 = vsyncpa [#allocation15], 0
    %42 = vsyncpa [#allocation4], 0
    %s43 = scalar_lea.sflag [#allocation4], 1
    %44 = vsyncpa %s43, 0
    loop: start=0, step=1, limit=4
    $region2: #{tpu_custom_call.1} parent=1 // loop_pre_header
      _
    $region3: #{tpu_custom_call.1} parent=1 // loop_header
      %s46 = sphi 0, %s50
      %p47 = scmp.ge.s32.totalorder %s46, 4
      %s56 = sphi 0, %s58
      %s59 = sphi 0, %s56
      %s60 = sphi 0, %s59
      %s76 = sphi 0, %s60
      %s82 = sphi 0, %s84
      %s85 = sphi 0, %s82
      %s86 = sphi 0, %s85
      %s102 = sphi 0, %s86
      %s106 = sphi 0, %s106
      %s108 = sphi 0, %s106
      %s109 = sphi 0, %s108
      %s123 = sphi 0, %s109
      %s127 = sphi 0, %s127
      %s129 = sphi 0, %s127
      %s130 = sphi 0, %s129
      %s144 = sphi 0, %s130
      %s148 = sphi 0, %s148
      %s150 = sphi 0, %s148
      %s151 = sphi 0, %s150
      %s165 = sphi 0, %s151
      %s169 = sphi 0, %s169
      %s171 = sphi 0, %s169
      %s172 = sphi 0, %s171
      %s186 = sphi 0, %s172
      %s190 = sphi 0, %s190
      %s192 = sphi 0, %s190
      %s193 = sphi 0, %s192
      %s207 = sphi 0, %s193
      %s211 = sphi 0, %s211
      %s213 = sphi 0, %s211
      %s214 = sphi 0, %s213
      %s228 = sphi 0, %s214
      %s232 = sphi 0, %s232
      %s234 = sphi 0, %s232
      %s235 = sphi 0, %s234
      %s249 = sphi 0, %s235
      %s253 = sphi 0, %s253
      %s255 = sphi 0, %s253
      %s256 = sphi 0, %s255
      %s270 = sphi 0, %s256
      %s274 = sphi 0, %s274
      %s276 = sphi 0, %s274
      %s277 = sphi 0, %s276
      %s291 = sphi 0, %s277
      %s295 = sphi 0, %s295
      %s297 = sphi 0, %s295
      %s298 = sphi 0, %s297
      %s312 = sphi 0, %s298
      %s316 = sphi 0, %s316
      %s318 = sphi 0, %s316
      %s319 = sphi 0, %s318
      %s333 = sphi 0, %s319
      %s337 = sphi 0, %s337
      %s339 = sphi 0, %s337
      %s340 = sphi 0, %s339
      %s354 = sphi 0, %s340
      %s358 = sphi 0, %s358
      %s360 = sphi 0, %s358
      %s361 = sphi 0, %s360
      %s375 = sphi 0, %s361
      %s379 = sphi 0, %s379
      %s381 = sphi 0, %s379
      %s382 = sphi 0, %s381
      %s396 = sphi 0, %s382
      %s400 = sphi 0, %s400
      %s402 = sphi 0, %s400
      %s403 = sphi 0, %s402
      %s417 = sphi 0, %s403
      %s421 = sphi 0, %s421
      %s423 = sphi 0, %s421
      %s424 = sphi 0, %s423
      %s438 = sphi 0, %s424
      %s442 = sphi 0, %s442
      %s444 = sphi 0, %s442
      %s445 = sphi 0, %s444
      %s459 = sphi 0, %s445
      %s463 = sphi 0, %s463
      %s465 = sphi 0, %s463
      %s466 = sphi 0, %s465
      %s480 = sphi 0, %s466
      %s484 = sphi 0, %s484
      %s486 = sphi 0, %s484
      %s487 = sphi 0, %s486
      %s501 = sphi 0, %s487
      %s505 = sphi 0, %s505
      %s507 = sphi 0, %s505
      %s508 = sphi 0, %s507
      %s522 = sphi 0, %s508
      %s526 = sphi 0, %s526
      %s528 = sphi 0, %s526
      %s529 = sphi 0, %s528
      %s543 = sphi 0, %s529
      %s547 = sphi 0, %s547
      %s549 = sphi 0, %s547
      %s550 = sphi 0, %s549
      %s564 = sphi 0, %s550
      %s568 = sphi 0, %s568
      %s570 = sphi 0, %s568
      %s571 = sphi 0, %s570
      %s585 = sphi 0, %s571
      %s589 = sphi 0, %s589
      %s591 = sphi 0, %s589
      %s592 = sphi 0, %s591
      %s606 = sphi 0, %s592
      %s610 = sphi 0, %s610
      %s612 = sphi 0, %s610
      %s613 = sphi 0, %s612
      %s627 = sphi 0, %s613
      %s631 = sphi 0, %s631
      %s633 = sphi 0, %s631
      %s634 = sphi 0, %s633
      %s648 = sphi 0, %s634
      %s654 = sphi 0, %s656
      %s657 = sphi 0, %s654
      %s658 = sphi 0, %s657
      %s674 = sphi 0, %s658
    $region4: #{tpu_custom_call.1} parent=1 // loop_header_branch
      %49 = sbr.rel (%p47) target = $region8
    $region5: #{tpu_custom_call.1} parent=1 // loop_body
      %s51 = ssub.s32 %s46, 1
      %s52 = ssub.s32 %s46, 2
      %s53 = sadd.s32 %s46, 1
      %s54 = ssub.s32 %s46, %s53
      %p55 = scmp.eq.s32.totalorder %s54, 0
      %s57 = sadd.s32 %s56, 1
      %s58 = scalar_select %p55, %s56, %s57
      %p61 = pneg %p55
      %p62 = scmp.eq.s32.totalorder %s46, 1
      %p63 = por %p61, %p62
      %p64 = scmp.ne.s32.totalorder %s56, %s59
      %p65 = scmp.eq.s32.totalorder %s46, 0
      %p66 = por %p64, %p65
      %p67 = scmp.ne.s32.totalorder %s56, %s59
      %p68 = scmp.eq.s32.totalorder %s51, 1
      %p69 = por %p67, %p68
      %p70 = scmp.ne.s32.totalorder %s59, %s60
      %p71 = scmp.eq.s32.totalorder %s51, 0
      %p72 = por %p70, %p71
      %p73 = scmp.ne.s32.totalorder %s59, %s60
      %p74 = scmp.eq.s32.totalorder %s52, 1
      %p75 = por %p73, %p74
      %p77 = scmp.ne.s32.totalorder %s60, %s76
      %p78 = scmp.eq.s32.totalorder %s52, 0
      %p79 = por %p77, %p78
      %s80 = ssub.s32 %s46, %s53
      %p81 = scmp.eq.s32.totalorder %s80, 0
      %s83 = sadd.s32 %s82, 1
      %s84 = scalar_select %p81, %s82, %s83
      %p87 = pneg %p81
      %p88 = scmp.eq.s32.totalorder %s46, 1
      %p89 = por %p87, %p88
      %p90 = scmp.ne.s32.totalorder %s82, %s85
      %p91 = scmp.eq.s32.totalorder %s46, 0
      %p92 = por %p90, %p91
      %p93 = scmp.ne.s32.totalorder %s82, %s85
      %p94 = scmp.eq.s32.totalorder %s51, 1
      %p95 = por %p93, %p94
      %p96 = scmp.ne.s32.totalorder %s85, %s86
      %p97 = scmp.eq.s32.totalorder %s51, 0
      %p98 = por %p96, %p97
      %p99 = scmp.ne.s32.totalorder %s85, %s86
      %p100 = scmp.eq.s32.totalorder %s52, 1
      %p101 = por %p99, %p100
      %p103 = scmp.ne.s32.totalorder %s86, %s102
      %p104 = scmp.eq.s32.totalorder %s52, 0
      %p105 = por %p103, %p104
      %s107 = sadd.s32 %s106, 1
      %p110 = scmp.eq.s32.totalorder %s46, 1
      %p111 = scmp.ne.s32.totalorder %s106, %s108
      %p112 = scmp.eq.s32.totalorder %s46, 0
      %p113 = por %p111, %p112
      %p114 = scmp.ne.s32.totalorder %s106, %s108
      %p115 = scmp.eq.s32.totalorder %s51, 1
      %p116 = por %p114, %p115
      %p117 = scmp.ne.s32.totalorder %s108, %s109
      %p118 = scmp.eq.s32.totalorder %s51, 0
      %p119 = por %p117, %p118
      %p120 = scmp.ne.s32.totalorder %s108, %s109
      %p121 = scmp.eq.s32.totalorder %s52, 1
      %p122 = por %p120, %p121
      %p124 = scmp.ne.s32.totalorder %s109, %s123
      %p125 = scmp.eq.s32.totalorder %s52, 0
      %p126 = por %p124, %p125
      %s128 = sadd.s32 %s127, 1
      %p131 = scmp.eq.s32.totalorder %s46, 1
      %p132 = scmp.ne.s32.totalorder %s127, %s129
      %p133 = scmp.eq.s32.totalorder %s46, 0
      %p134 = por %p132, %p133
      %p135 = scmp.ne.s32.totalorder %s127, %s129
      %p136 = scmp.eq.s32.totalorder %s51, 1
      %p137 = por %p135, %p136
      %p138 = scmp.ne.s32.totalorder %s129, %s130
      %p139 = scmp.eq.s32.totalorder %s51, 0
      %p140 = por %p138, %p139
      %p141 = scmp.ne.s32.totalorder %s129, %s130
      %p142 = scmp.eq.s32.totalorder %s52, 1
      %p143 = por %p141, %p142
      %p145 = scmp.ne.s32.totalorder %s130, %s144
      %p146 = scmp.eq.s32.totalorder %s52, 0
      %p147 = por %p145, %p146
      %s149 = sadd.s32 %s148, 1
      %p152 = scmp.eq.s32.totalorder %s46, 1
      %p153 = scmp.ne.s32.totalorder %s148, %s150
      %p154 = scmp.eq.s32.totalorder %s46, 0
      %p155 = por %p153, %p154
      %p156 = scmp.ne.s32.totalorder %s148, %s150
      %p157 = scmp.eq.s32.totalorder %s51, 1
      %p158 = por %p156, %p157
      %p159 = scmp.ne.s32.totalorder %s150, %s151
      %p160 = scmp.eq.s32.totalorder %s51, 0
      %p161 = por %p159, %p160
      %p162 = scmp.ne.s32.totalorder %s150, %s151
      %p163 = scmp.eq.s32.totalorder %s52, 1
      %p164 = por %p162, %p163
      %p166 = scmp.ne.s32.totalorder %s151, %s165
      %p167 = scmp.eq.s32.totalorder %s52, 0
      %p168 = por %p166, %p167
      %s170 = sadd.s32 %s169, 1
      %p173 = scmp.eq.s32.totalorder %s46, 1
      %p174 = scmp.ne.s32.totalorder %s169, %s171
      %p175 = scmp.eq.s32.totalorder %s46, 0
      %p176 = por %p174, %p175
      %p177 = scmp.ne.s32.totalorder %s169, %s171
      %p178 = scmp.eq.s32.totalorder %s51, 1
      %p179 = por %p177, %p178
      %p180 = scmp.ne.s32.totalorder %s171, %s172
      %p181 = scmp.eq.s32.totalorder %s51, 0
      %p182 = por %p180, %p181
      %p183 = scmp.ne.s32.totalorder %s171, %s172
      %p184 = scmp.eq.s32.totalorder %s52, 1
      %p185 = por %p183, %p184
      %p187 = scmp.ne.s32.totalorder %s172, %s186
      %p188 = scmp.eq.s32.totalorder %s52, 0
      %p189 = por %p187, %p188
      %s191 = sadd.s32 %s190, 1
      %p194 = scmp.eq.s32.totalorder %s46, 1
      %p195 = scmp.ne.s32.totalorder %s190, %s192
      %p196 = scmp.eq.s32.totalorder %s46, 0
      %p197 = por %p195, %p196
      %p198 = scmp.ne.s32.totalorder %s190, %s192
      %p199 = scmp.eq.s32.totalorder %s51, 1
      %p200 = por %p198, %p199
      %p201 = scmp.ne.s32.totalorder %s192, %s193
      %p202 = scmp.eq.s32.totalorder %s51, 0
      %p203 = por %p201, %p202
      %p204 = scmp.ne.s32.totalorder %s192, %s193
      %p205 = scmp.eq.s32.totalorder %s52, 1
      %p206 = por %p204, %p205
      %p208 = scmp.ne.s32.totalorder %s193, %s207
      %p209 = scmp.eq.s32.totalorder %s52, 0
      %p210 = por %p208, %p209
      %s212 = sadd.s32 %s211, 1
      %p215 = scmp.eq.s32.totalorder %s46, 1
      %p216 = scmp.ne.s32.totalorder %s211, %s213
      %p217 = scmp.eq.s32.totalorder %s46, 0
      %p218 = por %p216, %p217
      %p219 = scmp.ne.s32.totalorder %s211, %s213
      %p220 = scmp.eq.s32.totalorder %s51, 1
      %p221 = por %p219, %p220
      %p222 = scmp.ne.s32.totalorder %s213, %s214
      %p223 = scmp.eq.s32.totalorder %s51, 0
      %p224 = por %p222, %p223
      %p225 = scmp.ne.s32.totalorder %s213, %s214
      %p226 = scmp.eq.s32.totalorder %s52, 1
      %p227 = por %p225, %p226
      %p229 = scmp.ne.s32.totalorder %s214, %s228
      %p230 = scmp.eq.s32.totalorder %s52, 0
      %p231 = por %p229, %p230
      %s233 = sadd.s32 %s232, 1
      %p236 = scmp.eq.s32.totalorder %s46, 1
      %p237 = scmp.ne.s32.totalorder %s232, %s234
      %p238 = scmp.eq.s32.totalorder %s46, 0
      %p239 = por %p237, %p238
      %p240 = scmp.ne.s32.totalorder %s232, %s234
      %p241 = scmp.eq.s32.totalorder %s51, 1
      %p242 = por %p240, %p241
      %p243 = scmp.ne.s32.totalorder %s234, %s235
      %p244 = scmp.eq.s32.totalorder %s51, 0
      %p245 = por %p243, %p244
      %p246 = scmp.ne.s32.totalorder %s234, %s235
      %p247 = scmp.eq.s32.totalorder %s52, 1
      %p248 = por %p246, %p247
      %p250 = scmp.ne.s32.totalorder %s235, %s249
      %p251 = scmp.eq.s32.totalorder %s52, 0
      %p252 = por %p250, %p251
      %s254 = sadd.s32 %s253, 1
      %p257 = scmp.eq.s32.totalorder %s46, 1
      %p258 = scmp.ne.s32.totalorder %s253, %s255
      %p259 = scmp.eq.s32.totalorder %s46, 0
      %p260 = por %p258, %p259
      %p261 = scmp.ne.s32.totalorder %s253, %s255
      %p262 = scmp.eq.s32.totalorder %s51, 1
      %p263 = por %p261, %p262
      %p264 = scmp.ne.s32.totalorder %s255, %s256
      %p265 = scmp.eq.s32.totalorder %s51, 0
      %p266 = por %p264, %p265
      %p267 = scmp.ne.s32.totalorder %s255, %s256
      %p268 = scmp.eq.s32.totalorder %s52, 1
      %p269 = por %p267, %p268
      %p271 = scmp.ne.s32.totalorder %s256, %s270
      %p272 = scmp.eq.s32.totalorder %s52, 0
      %p273 = por %p271, %p272
      %s275 = sadd.s32 %s274, 1
      %p278 = scmp.eq.s32.totalorder %s46, 1
      %p279 = scmp.ne.s32.totalorder %s274, %s276
      %p280 = scmp.eq.s32.totalorder %s46, 0
      %p281 = por %p279, %p280
      %p282 = scmp.ne.s32.totalorder %s274, %s276
      %p283 = scmp.eq.s32.totalorder %s51, 1
      %p284 = por %p282, %p283
      %p285 = scmp.ne.s32.totalorder %s276, %s277
      %p286 = scmp.eq.s32.totalorder %s51, 0
      %p287 = por %p285, %p286
      %p288 = scmp.ne.s32.totalorder %s276, %s277
      %p289 = scmp.eq.s32.totalorder %s52, 1
      %p290 = por %p288, %p289
      %p292 = scmp.ne.s32.totalorder %s277, %s291
      %p293 = scmp.eq.s32.totalorder %s52, 0
      %p294 = por %p292, %p293
      %s296 = sadd.s32 %s295, 1
      %p299 = scmp.eq.s32.totalorder %s46, 1
      %p300 = scmp.ne.s32.totalorder %s295, %s297
      %p301 = scmp.eq.s32.totalorder %s46, 0
      %p302 = por %p300, %p301
      %p303 = scmp.ne.s32.totalorder %s295, %s297
      %p304 = scmp.eq.s32.totalorder %s51, 1
      %p305 = por %p303, %p304
      %p306 = scmp.ne.s32.totalorder %s297, %s298
      %p307 = scmp.eq.s32.totalorder %s51, 0
      %p308 = por %p306, %p307
      %p309 = scmp.ne.s32.totalorder %s297, %s298
      %p310 = scmp.eq.s32.totalorder %s52, 1
      %p311 = por %p309, %p310
      %p313 = scmp.ne.s32.totalorder %s298, %s312
      %p314 = scmp.eq.s32.totalorder %s52, 0
      %p315 = por %p313, %p314
      %s317 = sadd.s32 %s316, 1
      %p320 = scmp.eq.s32.totalorder %s46, 1
      %p321 = scmp.ne.s32.totalorder %s316, %s318
      %p322 = scmp.eq.s32.totalorder %s46, 0
      %p323 = por %p321, %p322
      %p324 = scmp.ne.s32.totalorder %s316, %s318
      %p325 = scmp.eq.s32.totalorder %s51, 1
      %p326 = por %p324, %p325
      %p327 = scmp.ne.s32.totalorder %s318, %s319
      %p328 = scmp.eq.s32.totalorder %s51, 0
      %p329 = por %p327, %p328
      %p330 = scmp.ne.s32.totalorder %s318, %s319
      %p331 = scmp.eq.s32.totalorder %s52, 1
      %p332 = por %p330, %p331
      %p334 = scmp.ne.s32.totalorder %s319, %s333
      %p335 = scmp.eq.s32.totalorder %s52, 0
      %p336 = por %p334, %p335
      %s338 = sadd.s32 %s337, 1
      %p341 = scmp.eq.s32.totalorder %s46, 1
      %p342 = scmp.ne.s32.totalorder %s337, %s339
      %p343 = scmp.eq.s32.totalorder %s46, 0
      %p344 = por %p342, %p343
      %p345 = scmp.ne.s32.totalorder %s337, %s339
      %p346 = scmp.eq.s32.totalorder %s51, 1
      %p347 = por %p345, %p346
      %p348 = scmp.ne.s32.totalorder %s339, %s340
      %p349 = scmp.eq.s32.totalorder %s51, 0
      %p350 = por %p348, %p349
      %p351 = scmp.ne.s32.totalorder %s339, %s340
      %p352 = scmp.eq.s32.totalorder %s52, 1
      %p353 = por %p351, %p352
      %p355 = scmp.ne.s32.totalorder %s340, %s354
      %p356 = scmp.eq.s32.totalorder %s52, 0
      %p357 = por %p355, %p356
      %s359 = sadd.s32 %s358, 1
      %p362 = scmp.eq.s32.totalorder %s46, 1
      %p363 = scmp.ne.s32.totalorder %s358, %s360
      %p364 = scmp.eq.s32.totalorder %s46, 0
      %p365 = por %p363, %p364
      %p366 = scmp.ne.s32.totalorder %s358, %s360
      %p367 = scmp.eq.s32.totalorder %s51, 1
      %p368 = por %p366, %p367
      %p369 = scmp.ne.s32.totalorder %s360, %s361
      %p370 = scmp.eq.s32.totalorder %s51, 0
      %p371 = por %p369, %p370
      %p372 = scmp.ne.s32.totalorder %s360, %s361
      %p373 = scmp.eq.s32.totalorder %s52, 1
      %p374 = por %p372, %p373
      %p376 = scmp.ne.s32.totalorder %s361, %s375
      %p377 = scmp.eq.s32.totalorder %s52, 0
      %p378 = por %p376, %p377
      %s380 = sadd.s32 %s379, 1
      %p383 = scmp.eq.s32.totalorder %s46, 1
      %p384 = scmp.ne.s32.totalorder %s379, %s381
      %p385 = scmp.eq.s32.totalorder %s46, 0
      %p386 = por %p384, %p385
      %p387 = scmp.ne.s32.totalorder %s379, %s381
      %p388 = scmp.eq.s32.totalorder %s51, 1
      %p389 = por %p387, %p388
      %p390 = scmp.ne.s32.totalorder %s381, %s382
      %p391 = scmp.eq.s32.totalorder %s51, 0
      %p392 = por %p390, %p391
      %p393 = scmp.ne.s32.totalorder %s381, %s382
      %p394 = scmp.eq.s32.totalorder %s52, 1
      %p395 = por %p393, %p394
      %p397 = scmp.ne.s32.totalorder %s382, %s396
      %p398 = scmp.eq.s32.totalorder %s52, 0
      %p399 = por %p397, %p398
      %s401 = sadd.s32 %s400, 1
      %p404 = scmp.eq.s32.totalorder %s46, 1
      %p405 = scmp.ne.s32.totalorder %s400, %s402
      %p406 = scmp.eq.s32.totalorder %s46, 0
      %p407 = por %p405, %p406
      %p408 = scmp.ne.s32.totalorder %s400, %s402
      %p409 = scmp.eq.s32.totalorder %s51, 1
      %p410 = por %p408, %p409
      %p411 = scmp.ne.s32.totalorder %s402, %s403
      %p412 = scmp.eq.s32.totalorder %s51, 0
      %p413 = por %p411, %p412
      %p414 = scmp.ne.s32.totalorder %s402, %s403
      %p415 = scmp.eq.s32.totalorder %s52, 1
      %p416 = por %p414, %p415
      %p418 = scmp.ne.s32.totalorder %s403, %s417
      %p419 = scmp.eq.s32.totalorder %s52, 0
      %p420 = por %p418, %p419
      %s422 = sadd.s32 %s421, 1
      %p425 = scmp.eq.s32.totalorder %s46, 1
      %p426 = scmp.ne.s32.totalorder %s421, %s423
      %p427 = scmp.eq.s32.totalorder %s46, 0
      %p428 = por %p426, %p427
      %p429 = scmp.ne.s32.totalorder %s421, %s423
      %p430 = scmp.eq.s32.totalorder %s51, 1
      %p431 = por %p429, %p430
      %p432 = scmp.ne.s32.totalorder %s423, %s424
      %p433 = scmp.eq.s32.totalorder %s51, 0
      %p434 = por %p432, %p433
      %p435 = scmp.ne.s32.totalorder %s423, %s424
      %p436 = scmp.eq.s32.totalorder %s52, 1
      %p437 = por %p435, %p436
      %p439 = scmp.ne.s32.totalorder %s424, %s438
      %p440 = scmp.eq.s32.totalorder %s52, 0
      %p441 = por %p439, %p440
      %s443 = sadd.s32 %s442, 1
      %p446 = scmp.eq.s32.totalorder %s46, 1
      %p447 = scmp.ne.s32.totalorder %s442, %s444
      %p448 = scmp.eq.s32.totalorder %s46, 0
      %p449 = por %p447, %p448
      %p450 = scmp.ne.s32.totalorder %s442, %s444
      %p451 = scmp.eq.s32.totalorder %s51, 1
      %p452 = por %p450, %p451
      %p453 = scmp.ne.s32.totalorder %s444, %s445
      %p454 = scmp.eq.s32.totalorder %s51, 0
      %p455 = por %p453, %p454
      %p456 = scmp.ne.s32.totalorder %s444, %s445
      %p457 = scmp.eq.s32.totalorder %s52, 1
      %p458 = por %p456, %p457
      %p460 = scmp.ne.s32.totalorder %s445, %s459
      %p461 = scmp.eq.s32.totalorder %s52, 0
      %p462 = por %p460, %p461
      %s464 = sadd.s32 %s463, 1
      %p467 = scmp.eq.s32.totalorder %s46, 1
      %p468 = scmp.ne.s32.totalorder %s463, %s465
      %p469 = scmp.eq.s32.totalorder %s46, 0
      %p470 = por %p468, %p469
      %p471 = scmp.ne.s32.totalorder %s463, %s465
      %p472 = scmp.eq.s32.totalorder %s51, 1
      %p473 = por %p471, %p472
      %p474 = scmp.ne.s32.totalorder %s465, %s466
      %p475 = scmp.eq.s32.totalorder %s51, 0
      %p476 = por %p474, %p475
      %p477 = scmp.ne.s32.totalorder %s465, %s466
      %p478 = scmp.eq.s32.totalorder %s52, 1
      %p479 = por %p477, %p478
      %p481 = scmp.ne.s32.totalorder %s466, %s480
      %p482 = scmp.eq.s32.totalorder %s52, 0
      %p483 = por %p481, %p482
      %s485 = sadd.s32 %s484, 1
      %p488 = scmp.eq.s32.totalorder %s46, 1
      %p489 = scmp.ne.s32.totalorder %s484, %s486
      %p490 = scmp.eq.s32.totalorder %s46, 0
      %p491 = por %p489, %p490
      %p492 = scmp.ne.s32.totalorder %s484, %s486
      %p493 = scmp.eq.s32.totalorder %s51, 1
      %p494 = por %p492, %p493
      %p495 = scmp.ne.s32.totalorder %s486, %s487
      %p496 = scmp.eq.s32.totalorder %s51, 0
      %p497 = por %p495, %p496
      %p498 = scmp.ne.s32.totalorder %s486, %s487
      %p499 = scmp.eq.s32.totalorder %s52, 1
      %p500 = por %p498, %p499
      %p502 = scmp.ne.s32.totalorder %s487, %s501
      %p503 = scmp.eq.s32.totalorder %s52, 0
      %p504 = por %p502, %p503
      %s506 = sadd.s32 %s505, 1
      %p509 = scmp.eq.s32.totalorder %s46, 1
      %p510 = scmp.ne.s32.totalorder %s505, %s507
      %p511 = scmp.eq.s32.totalorder %s46, 0
      %p512 = por %p510, %p511
      %p513 = scmp.ne.s32.totalorder %s505, %s507
      %p514 = scmp.eq.s32.totalorder %s51, 1
      %p515 = por %p513, %p514
      %p516 = scmp.ne.s32.totalorder %s507, %s508
      %p517 = scmp.eq.s32.totalorder %s51, 0
      %p518 = por %p516, %p517
      %p519 = scmp.ne.s32.totalorder %s507, %s508
      %p520 = scmp.eq.s32.totalorder %s52, 1
      %p521 = por %p519, %p520
      %p523 = scmp.ne.s32.totalorder %s508, %s522
      %p524 = scmp.eq.s32.totalorder %s52, 0
      %p525 = por %p523, %p524
      %s527 = sadd.s32 %s526, 1
      %p530 = scmp.eq.s32.totalorder %s46, 1
      %p531 = scmp.ne.s32.totalorder %s526, %s528
      %p532 = scmp.eq.s32.totalorder %s46, 0
      %p533 = por %p531, %p532
      %p534 = scmp.ne.s32.totalorder %s526, %s528
      %p535 = scmp.eq.s32.totalorder %s51, 1
      %p536 = por %p534, %p535
      %p537 = scmp.ne.s32.totalorder %s528, %s529
      %p538 = scmp.eq.s32.totalorder %s51, 0
      %p539 = por %p537, %p538
      %p540 = scmp.ne.s32.totalorder %s528, %s529
      %p541 = scmp.eq.s32.totalorder %s52, 1
      %p542 = por %p540, %p541
      %p544 = scmp.ne.s32.totalorder %s529, %s543
      %p545 = scmp.eq.s32.totalorder %s52, 0
      %p546 = por %p544, %p545
      %s548 = sadd.s32 %s547, 1
      %p551 = scmp.eq.s32.totalorder %s46, 1
      %p552 = scmp.ne.s32.totalorder %s547, %s549
      %p553 = scmp.eq.s32.totalorder %s46, 0
      %p554 = por %p552, %p553
      %p555 = scmp.ne.s32.totalorder %s547, %s549
      %p556 = scmp.eq.s32.totalorder %s51, 1
      %p557 = por %p555, %p556
      %p558 = scmp.ne.s32.totalorder %s549, %s550
      %p559 = scmp.eq.s32.totalorder %s51, 0
      %p560 = por %p558, %p559
      %p561 = scmp.ne.s32.totalorder %s549, %s550
      %p562 = scmp.eq.s32.totalorder %s52, 1
      %p563 = por %p561, %p562
      %p565 = scmp.ne.s32.totalorder %s550, %s564
      %p566 = scmp.eq.s32.totalorder %s52, 0
      %p567 = por %p565, %p566
      %s569 = sadd.s32 %s568, 1
      %p572 = scmp.eq.s32.totalorder %s46, 1
      %p573 = scmp.ne.s32.totalorder %s568, %s570
      %p574 = scmp.eq.s32.totalorder %s46, 0
      %p575 = por %p573, %p574
      %p576 = scmp.ne.s32.totalorder %s568, %s570
      %p577 = scmp.eq.s32.totalorder %s51, 1
      %p578 = por %p576, %p577
      %p579 = scmp.ne.s32.totalorder %s570, %s571
      %p580 = scmp.eq.s32.totalorder %s51, 0
      %p581 = por %p579, %p580
      %p582 = scmp.ne.s32.totalorder %s570, %s571
      %p583 = scmp.eq.s32.totalorder %s52, 1
      %p584 = por %p582, %p583
      %p586 = scmp.ne.s32.totalorder %s571, %s585
      %p587 = scmp.eq.s32.totalorder %s52, 0
      %p588 = por %p586, %p587
      %s590 = sadd.s32 %s589, 1
      %p593 = scmp.eq.s32.totalorder %s46, 1
      %p594 = scmp.ne.s32.totalorder %s589, %s591
      %p595 = scmp.eq.s32.totalorder %s46, 0
      %p596 = por %p594, %p595
      %p597 = scmp.ne.s32.totalorder %s589, %s591
      %p598 = scmp.eq.s32.totalorder %s51, 1
      %p599 = por %p597, %p598
      %p600 = scmp.ne.s32.totalorder %s591, %s592
      %p601 = scmp.eq.s32.totalorder %s51, 0
      %p602 = por %p600, %p601
      %p603 = scmp.ne.s32.totalorder %s591, %s592
      %p604 = scmp.eq.s32.totalorder %s52, 1
      %p605 = por %p603, %p604
      %p607 = scmp.ne.s32.totalorder %s592, %s606
      %p608 = scmp.eq.s32.totalorder %s52, 0
      %p609 = por %p607, %p608
      %s611 = sadd.s32 %s610, 1
      %p614 = scmp.eq.s32.totalorder %s46, 1
      %p615 = scmp.ne.s32.totalorder %s610, %s612
      %p616 = scmp.eq.s32.totalorder %s46, 0
      %p617 = por %p615, %p616
      %p618 = scmp.ne.s32.totalorder %s610, %s612
      %p619 = scmp.eq.s32.totalorder %s51, 1
      %p620 = por %p618, %p619
      %p621 = scmp.ne.s32.totalorder %s612, %s613
      %p622 = scmp.eq.s32.totalorder %s51, 0
      %p623 = por %p621, %p622
      %p624 = scmp.ne.s32.totalorder %s612, %s613
      %p625 = scmp.eq.s32.totalorder %s52, 1
      %p626 = por %p624, %p625
      %p628 = scmp.ne.s32.totalorder %s613, %s627
      %p629 = scmp.eq.s32.totalorder %s52, 0
      %p630 = por %p628, %p629
      %s632 = sadd.s32 %s631, 1
      %p635 = scmp.eq.s32.totalorder %s46, 1
      %p636 = scmp.ne.s32.totalorder %s631, %s633
      %p637 = scmp.eq.s32.totalorder %s46, 0
      %p638 = por %p636, %p637
      %p639 = scmp.ne.s32.totalorder %s631, %s633
      %p640 = scmp.eq.s32.totalorder %s51, 1
      %p641 = por %p639, %p640
      %p642 = scmp.ne.s32.totalorder %s633, %s634
      %p643 = scmp.eq.s32.totalorder %s51, 0
      %p644 = por %p642, %p643
      %p645 = scmp.ne.s32.totalorder %s633, %s634
      %p646 = scmp.eq.s32.totalorder %s52, 1
      %p647 = por %p645, %p646
      %p649 = scmp.ne.s32.totalorder %s634, %s648
      %p650 = scmp.eq.s32.totalorder %s52, 0
      %p651 = por %p649, %p650
      %s652 = ssub.s32 %s46, %s53
      %p653 = scmp.eq.s32.totalorder %s652, 0
      %s655 = sadd.s32 %s654, 1
      %s656 = scalar_select %p653, %s654, %s655
      %p659 = pneg %p653
      %p660 = scmp.eq.s32.totalorder %s46, 1
      %p661 = por %p659, %p660
      %p662 = scmp.ne.s32.totalorder %s654, %s657
      %p663 = scmp.eq.s32.totalorder %s46, 0
      %p664 = por %p662, %p663
      %p665 = scmp.ne.s32.totalorder %s654, %s657
      %p666 = scmp.eq.s32.totalorder %s51, 1
      %p667 = por %p665, %p666
      %p668 = scmp.ne.s32.totalorder %s657, %s658
      %p669 = scmp.eq.s32.totalorder %s51, 0
      %p670 = por %p668, %p669
      %p671 = scmp.ne.s32.totalorder %s657, %s658
      %p672 = scmp.eq.s32.totalorder %s52, 1
      %p673 = por %p671, %p672
      %p675 = scmp.ne.s32.totalorder %s658, %s674
      %p676 = scmp.eq.s32.totalorder %s52, 0
      %p677 = por %p675, %p676
      %p678 = scmp.le.s32.totalorder 1, %s46
      %p679 = scmp.lt.s32.totalorder %s46, 3
      %p680 = pnand %p678, %p679
      %p681 = pneg %p680
      // Predicated region
      $region9: #{tpu_custom_call.1} parent=5 // pred_check
        _
      $region10: #{tpu_custom_call.1} parent=5 // pred_check_branch
        %683 = sbr.rel (%p680) target = $region12
      $region11: #{tpu_custom_call.1} parent=5 // pred_region
        %s684 = ssub.s32 %s46, 1
        // Predicated region
        $region13: #{tpu_custom_call.1} parent=11 // pred_check
          %p685 = pneg %p119
        $region14: #{tpu_custom_call.1} parent=11 // pred_check_branch
          %687 = sbr.rel (%p685) target = $region16
        $region15: #{tpu_custom_call.1} parent=11 // pred_region
          _
        $region16: #{tpu_custom_call.1} parent=11 // pred_fallthru
          _
        // Predicated region
        $region17: #{tpu_custom_call.1} parent=11 // pred_check
          %p688 = pneg %p140
        $region18: #{tpu_custom_call.1} parent=11 // pred_check_branch
          %690 = sbr.rel (%p688) target = $region20
        $region19: #{tpu_custom_call.1} parent=11 // pred_region
          _
        $region20: #{tpu_custom_call.1} parent=11 // pred_fallthru
          _
        // Predicated region
        $region21: #{tpu_custom_call.1} parent=11 // pred_check
          %p691 = pneg %p161
        $region22: #{tpu_custom_call.1} parent=11 // pred_check_branch
          %693 = sbr.rel (%p691) target = $region24
        $region23: #{tpu_custom_call.1} parent=11 // pred_region
          _
        $region24: #{tpu_custom_call.1} parent=11 // pred_fallthru
          _
        // Predicated region
        $region25: #{tpu_custom_call.1} parent=11 // pred_check
          %p694 = pneg %p182
        $region26: #{tpu_custom_call.1} parent=11 // pred_check_branch
          %696 = sbr.rel (%p694) target = $region28
        $region27: #{tpu_custom_call.1} parent=11 // pred_region
          _
        $region28: #{tpu_custom_call.1} parent=11 // pred_fallthru
          _
        // Predicated region
        $region29: #{tpu_custom_call.1} parent=11 // pred_check
          %p697 = pneg %p203
        $region30: #{tpu_custom_call.1} parent=11 // pred_check_branch
          %699 = sbr.rel (%p697) target = $region32
        $region31: #{tpu_custom_call.1} parent=11 // pred_region
          _
        $region32: #{tpu_custom_call.1} parent=11 // pred_fallthru
          _
        // Predicated region
        $region33: #{tpu_custom_call.1} parent=11 // pred_check
          %p700 = pneg %p224
        $region34: #{tpu_custom_call.1} parent=11 // pred_check_branch
          %702 = sbr.rel (%p700) target = $region36
        $region35: #{tpu_custom_call.1} parent=11 // pred_region
          _
        $region36: #{tpu_custom_call.1} parent=11 // pred_fallthru
          _
        // Predicated region
        $region37: #{tpu_custom_call.1} parent=11 // pred_check
          %p703 = pneg %p245
        $region38: #{tpu_custom_call.1} parent=11 // pred_check_branch
          %705 = sbr.rel (%p703) target = $region40
        $region39: #{tpu_custom_call.1} parent=11 // pred_region
          %707 = vsyncadd [#allocation6], 0
          %s708 = sshll.u32 %s8, 4
          %s709 = int_to_ptr.hbm [resolvable:$true] %s708
          %s710 = sshll.u32 [#allocation7], 4
          %s711 = int_to_ptr.vmem [resolvable:$true] %s710
          %716 = dma.hbm_to_vmem [thread:$0]  %s709, 512, %s711, [#allocation6], 128, 128, 8
        $region40: #{tpu_custom_call.1} parent=11 // pred_fallthru
          _
        // Predicated region
        $region41: #{tpu_custom_call.1} parent=11 // pred_check
          %p717 = pneg %p266
        $region42: #{tpu_custom_call.1} parent=11 // pred_check_branch
          %719 = sbr.rel (%p717) target = $region44
        $region43: #{tpu_custom_call.1} parent=11 // pred_region
          _
        $region44: #{tpu_custom_call.1} parent=11 // pred_fallthru
          _
        // Predicated region
        $region45: #{tpu_custom_call.1} parent=11 // pred_check
          %p720 = pneg %p287
        $region46: #{tpu_custom_call.1} parent=11 // pred_check_branch
          %722 = sbr.rel (%p720) target = $region48
        $region47: #{tpu_custom_call.1} parent=11 // pred_region
          _
        $region48: #{tpu_custom_call.1} parent=11 // pred_fallthru
          _
        // Predicated region
        $region49: #{tpu_custom_call.1} parent=11 // pred_check
          %p723 = pneg %p308
        $region50: #{tpu_custom_call.1} parent=11 // pred_check_branch
          %725 = sbr.rel (%p723) target = $region52
        $region51: #{tpu_custom_call.1} parent=11 // pred_region
          _
        $region52: #{tpu_custom_call.1} parent=11 // pred_fallthru
          _
        // Predicated region
        $region53: #{tpu_custom_call.1} parent=11 // pred_check
          %p726 = pneg %p329
        $region54: #{tpu_custom_call.1} parent=11 // pred_check_branch
          %728 = sbr.rel (%p726) target = $region56
        $region55: #{tpu_custom_call.1} parent=11 // pred_region
          %730 = vsyncadd [#allocation9], 0
          %s731 = sshll.u32 %s12, 4
          %s732 = int_to_ptr.hbm [resolvable:$true] %s731
          %s733 = sshll.u32 [#allocation8], 4
          %s734 = int_to_ptr.vmem [resolvable:$true] %s733
          %739 = dma.hbm_to_vmem [thread:$0]  %s732, 512, %s734, [#allocation9], 128, 128, 8
        $region56: #{tpu_custom_call.1} parent=11 // pred_fallthru
          _
        // Predicated region
        $region57: #{tpu_custom_call.1} parent=11 // pred_check
          %p740 = pneg %p350
        $region58: #{tpu_custom_call.1} parent=11 // pred_check_branch
          %742 = sbr.rel (%p740) target = $region60
        $region59: #{tpu_custom_call.1} parent=11 // pred_region
          _
        $region60: #{tpu_custom_call.1} parent=11 // pred_fallthru
          _
        // Predicated region
        $region61: #{tpu_custom_call.1} parent=11 // pred_check
          %p743 = pneg %p371
        $region62: #{tpu_custom_call.1} parent=11 // pred_check_branch
          %745 = sbr.rel (%p743) target = $region64
        $region63: #{tpu_custom_call.1} parent=11 // pred_region
          %747 = vsyncadd [#allocation9], 0
          %s748 = sshll.u32 %s14, 4
          %s749 = int_to_ptr.hbm [resolvable:$true] %s748
          %s750 = sshll.u32 [#allocation10], 4
          %s751 = int_to_ptr.vmem [resolvable:$true] %s750
          %756 = dma.hbm_to_vmem [thread:$0]  %s749, 512, %s751, [#allocation9], 128, 128, 8
        $region64: #{tpu_custom_call.1} parent=11 // pred_fallthru
          _
        // Predicated region
        $region65: #{tpu_custom_call.1} parent=11 // pred_check
          %p757 = pneg %p392
        $region66: #{tpu_custom_call.1} parent=11 // pred_check_branch
          %759 = sbr.rel (%p757) target = $region68
        $region67: #{tpu_custom_call.1} parent=11 // pred_region
          _
        $region68: #{tpu_custom_call.1} parent=11 // pred_fallthru
          _
        // Predicated region
        $region69: #{tpu_custom_call.1} parent=11 // pred_check
          %p760 = pneg %p413
        $region70: #{tpu_custom_call.1} parent=11 // pred_check_branch
          %762 = sbr.rel (%p760) target = $region72
        $region71: #{tpu_custom_call.1} parent=11 // pred_region
          %764 = vsyncadd [#allocation12], 0
          %s765 = sshll.u32 %s16, 4
          %s766 = int_to_ptr.hbm [resolvable:$true] %s765
          %s767 = sshll.u32 [#allocation11], 4
          %s768 = int_to_ptr.vmem [resolvable:$true] %s767
          %773 = dma.hbm_to_vmem [thread:$0]  %s766, 512, %s768, [#allocation12], 128, 128, 8
        $region72: #{tpu_custom_call.1} parent=11 // pred_fallthru
          _
        // Predicated region
        $region73: #{tpu_custom_call.1} parent=11 // pred_check
          %p774 = pneg %p434
        $region74: #{tpu_custom_call.1} parent=11 // pred_check_branch
          %776 = sbr.rel (%p774) target = $region76
        $region75: #{tpu_custom_call.1} parent=11 // pred_region
          _
        $region76: #{tpu_custom_call.1} parent=11 // pred_fallthru
          _
        // Predicated region
        $region77: #{tpu_custom_call.1} parent=11 // pred_check
          %p777 = pneg %p455
        $region78: #{tpu_custom_call.1} parent=11 // pred_check_branch
          %779 = sbr.rel (%p777) target = $region80
        $region79: #{tpu_custom_call.1} parent=11 // pred_region
          %781 = vsyncadd [#allocation12], 0
          %s782 = sshll.u32 %s18, 4
          %s783 = int_to_ptr.hbm [resolvable:$true] %s782
          %s784 = sshll.u32 [#allocation13], 4
          %s785 = int_to_ptr.vmem [resolvable:$true] %s784
          %790 = dma.hbm_to_vmem [thread:$0]  %s783, 512, %s785, [#allocation12], 128, 128, 8
        $region80: #{tpu_custom_call.1} parent=11 // pred_fallthru
          _
        // Predicated region
        $region81: #{tpu_custom_call.1} parent=11 // pred_check
          %p791 = pneg %p476
        $region82: #{tpu_custom_call.1} parent=11 // pred_check_branch
          %793 = sbr.rel (%p791) target = $region84
        $region83: #{tpu_custom_call.1} parent=11 // pred_region
          _
        $region84: #{tpu_custom_call.1} parent=11 // pred_fallthru
          _
        // Predicated region
        $region85: #{tpu_custom_call.1} parent=11 // pred_check
          %p794 = pneg %p497
        $region86: #{tpu_custom_call.1} parent=11 // pred_check_branch
          %796 = sbr.rel (%p794) target = $region88
        $region87: #{tpu_custom_call.1} parent=11 // pred_region
          _
        $region88: #{tpu_custom_call.1} parent=11 // pred_fallthru
          _
        // Predicated region
        $region89: #{tpu_custom_call.1} parent=11 // pred_check
          %p797 = pneg %p518
        $region90: #{tpu_custom_call.1} parent=11 // pred_check_branch
          %799 = sbr.rel (%p797) target = $region92
        $region91: #{tpu_custom_call.1} parent=11 // pred_region
          _
        $region92: #{tpu_custom_call.1} parent=11 // pred_fallthru
          _
        // Predicated region
        $region93: #{tpu_custom_call.1} parent=11 // pred_check
          %p800 = pneg %p539
        $region94: #{tpu_custom_call.1} parent=11 // pred_check_branch
          %802 = sbr.rel (%p800) target = $region96
        $region95: #{tpu_custom_call.1} parent=11 // pred_region
          %804 = vsyncadd [#allocation15], 0
          %s805 = sshll.u32 %s22, 4
          %s806 = int_to_ptr.hbm [resolvable:$true] %s805
          %s807 = sshll.u32 [#allocation14], 4
          %s808 = int_to_ptr.vmem [resolvable:$true] %s807
          %813 = dma.hbm_to_vmem [thread:$0]  %s806, 512, %s808, [#allocation15], 128, 128, 8
        $region96: #{tpu_custom_call.1} parent=11 // pred_fallthru
          _
        // Predicated region
        $region97: #{tpu_custom_call.1} parent=11 // pred_check
          %p814 = pneg %p560
        $region98: #{tpu_custom_call.1} parent=11 // pred_check_branch
          %816 = sbr.rel (%p814) target = $region100
        $region99: #{tpu_custom_call.1} parent=11 // pred_region
          _
        $region100: #{tpu_custom_call.1} parent=11 // pred_fallthru
          _
        // Predicated region
        $region101: #{tpu_custom_call.1} parent=11 // pred_check
          %p817 = pneg %p581
        $region102: #{tpu_custom_call.1} parent=11 // pred_check_branch
          %819 = sbr.rel (%p817) target = $region104
        $region103: #{tpu_custom_call.1} parent=11 // pred_region
          _
        $region104: #{tpu_custom_call.1} parent=11 // pred_fallthru
          _
        // Predicated region
        $region105: #{tpu_custom_call.1} parent=11 // pred_check
          %p820 = pneg %p602
        $region106: #{tpu_custom_call.1} parent=11 // pred_check_branch
          %822 = sbr.rel (%p820) target = $region108
        $region107: #{tpu_custom_call.1} parent=11 // pred_region
          _
        $region108: #{tpu_custom_call.1} parent=11 // pred_fallthru
          _
        // Predicated region
        $region109: #{tpu_custom_call.1} parent=11 // pred_check
          %p823 = pneg %p623
        $region110: #{tpu_custom_call.1} parent=11 // pred_check_branch
          %825 = sbr.rel (%p823) target = $region112
        $region111: #{tpu_custom_call.1} parent=11 // pred_region
          _
        $region112: #{tpu_custom_call.1} parent=11 // pred_fallthru
          _
        // Predicated region
        $region113: #{tpu_custom_call.1} parent=11 // pred_check
          %p826 = pneg %p644
        $region114: #{tpu_custom_call.1} parent=11 // pred_check_branch
          %828 = sbr.rel (%p826) target = $region116
        $region115: #{tpu_custom_call.1} parent=11 // pred_region
          _
        $region116: #{tpu_custom_call.1} parent=11 // pred_fallthru
          _
      $region12: #{tpu_custom_call.1} parent=5 // pred_fallthru
        _
      %p829 = scmp.lt.s32.totalorder %s46, 2
      // Predicated region
      $region117: #{tpu_custom_call.1} parent=5 // pred_check
        %p830 = pneg %p829
      $region118: #{tpu_custom_call.1} parent=5 // pred_check_branch
        %832 = sbr.rel (%p830) target = $region120
      $region119: #{tpu_custom_call.1} parent=5 // pred_region
        // Predicated region
        $region121: #{tpu_custom_call.1} parent=119 // pred_check
          %p833 = pneg %p66
        $region122: #{tpu_custom_call.1} parent=119 // pred_check_branch
          %835 = sbr.rel (%p833) target = $region124
        $region123: #{tpu_custom_call.1} parent=119 // pred_region
          %s836 = sand.u32 %s56, 1
          %s837 = scalar_lea.sflag [#allocation3], %s836
          %s838 = sand.u32 %s56, 1
          %s839 = smul.addr %s838, 8
          %s840 = scalar_lea.vmem [#allocation2], %s839
          %842 = vsyncadd %s837, 0
          %s843 = smul.addr %s46, 8
          %s844 = scalar_lea.hbm %s0, %s843
          %s846 = sshll.u32 %s844, 4
          %s847 = int_to_ptr.hbm [resolvable:$true] %s846
          %s848 = sshll.u32 %s840, 4
          %s849 = int_to_ptr.vmem [resolvable:$true] %s848
          %851 = dma.hbm_to_vmem [thread:$0]  %s847, 128, %s849, %s837
        $region124: #{tpu_custom_call.1} parent=119 // pred_fallthru
          _
        // Predicated region
        $region125: #{tpu_custom_call.1} parent=119 // pred_check
          %p852 = pneg %p92
        $region126: #{tpu_custom_call.1} parent=119 // pred_check_branch
          %854 = sbr.rel (%p852) target = $region128
        $region127: #{tpu_custom_call.1} parent=119 // pred_region
          %s855 = sand.u32 %s46, 1
          %s856 = scalar_lea.sflag [#allocation6], %s855
          %s857 = sand.u32 %s82, 1
          %s858 = smul.addr %s857, 8
          %s859 = scalar_lea.vmem [#allocation5], %s858
          %861 = vsyncadd %s856, 0
          %s862 = smul.addr %s46, 8
          %s863 = scalar_lea.hbm %s1, %s862
          %s865 = sshll.u32 %s863, 4
          %s866 = int_to_ptr.hbm [resolvable:$true] %s865
          %s867 = sshll.u32 %s859, 4
          %s868 = int_to_ptr.vmem [resolvable:$true] %s867
          %870 = dma.hbm_to_vmem [thread:$0]  %s866, 128, %s868, %s856
        $region128: #{tpu_custom_call.1} parent=119 // pred_fallthru
          _
      $region120: #{tpu_custom_call.1} parent=5 // pred_fallthru
        _
      %p871 = scmp.le.s32.totalorder 1, %s46
      %p872 = scmp.lt.s32.totalorder %s46, 3
      %p873 = pnand %p871, %p872
      %p874 = pneg %p873
      // Predicated region
      $region129: #{tpu_custom_call.1} parent=5 // pred_check
        _
      $region130: #{tpu_custom_call.1} parent=5 // pred_check_branch
        %876 = sbr.rel (%p873) target = $region132
      $region131: #{tpu_custom_call.1} parent=5 // pred_region
        %s877 = ssub.s32 %s46, 1
        %s878 = sand.u32 %s59, 1
        %s879 = scalar_lea.sflag [#allocation3], %s878
        %s880 = sand.u32 %s59, 1
        %s881 = smul.addr %s880, 8
        %s882 = scalar_lea.vmem [#allocation2], %s881
        // Predicated region
        $region133: #{tpu_custom_call.1} parent=131 // pred_check
          %p883 = pneg %p72
        $region134: #{tpu_custom_call.1} parent=131 // pred_check_branch
          %885 = sbr.rel (%p883) target = $region136
        $region135: #{tpu_custom_call.1} parent=131 // pred_region
          %887 = dma.done %s879, 128
        $region136: #{tpu_custom_call.1} parent=131 // pred_fallthru
          _
        %s888 = sand.u32 %s51, 1
        %s889 = scalar_lea.sflag [#allocation6], %s888
        %s890 = sand.u32 %s85, 1
        %s891 = smul.addr %s890, 8
        %s892 = scalar_lea.vmem [#allocation5], %s891
        // Predicated region
        $region137: #{tpu_custom_call.1} parent=131 // pred_check
          %p893 = pneg %p98
        $region138: #{tpu_custom_call.1} parent=131 // pred_check_branch
          %895 = sbr.rel (%p893) target = $region140
        $region139: #{tpu_custom_call.1} parent=131 // pred_region
          %897 = dma.done %s889, 128
        $region140: #{tpu_custom_call.1} parent=131 // pred_fallthru
          _
        // Predicated region
        $region141: #{tpu_custom_call.1} parent=131 // pred_check
          %p898 = pneg %p245
        $region142: #{tpu_custom_call.1} parent=131 // pred_check_branch
          %900 = sbr.rel (%p898) target = $region144
        $region143: #{tpu_custom_call.1} parent=131 // pred_region
          %902 = dma.done [#allocation6], 512
        $region144: #{tpu_custom_call.1} parent=131 // pred_fallthru
          _
        // Predicated region
        $region145: #{tpu_custom_call.1} parent=131 // pred_check
          %p903 = pneg %p329
        $region146: #{tpu_custom_call.1} parent=131 // pred_check_branch
          %905 = sbr.rel (%p903) target = $region148
        $region147: #{tpu_custom_call.1} parent=131 // pred_region
          %907 = dma.done [#allocation9], 512
        $region148: #{tpu_custom_call.1} parent=131 // pred_fallthru
          _
        // Predicated region
        $region149: #{tpu_custom_call.1} parent=131 // pred_check
          %p908 = pneg %p371
        $region150: #{tpu_custom_call.1} parent=131 // pred_check_branch
          %910 = sbr.rel (%p908) target = $region152
        $region151: #{tpu_custom_call.1} parent=131 // pred_region
          %912 = dma.done [#allocation9], 512
        $region152: #{tpu_custom_call.1} parent=131 // pred_fallthru
          _
        // Predicated region
        $region153: #{tpu_custom_call.1} parent=131 // pred_check
          %p913 = pneg %p413
        $region154: #{tpu_custom_call.1} parent=131 // pred_check_branch
          %915 = sbr.rel (%p913) target = $region156
        $region155: #{tpu_custom_call.1} parent=131 // pred_region
          %917 = dma.done [#allocation12], 512
        $region156: #{tpu_custom_call.1} parent=131 // pred_fallthru
          _
        // Predicated region
        $region157: #{tpu_custom_call.1} parent=131 // pred_check
          %p918 = pneg %p455
        $region158: #{tpu_custom_call.1} parent=131 // pred_check_branch
          %920 = sbr.rel (%p918) target = $region160
        $region159: #{tpu_custom_call.1} parent=131 // pred_region
          %922 = dma.done [#allocation12], 512
        $region160: #{tpu_custom_call.1} parent=131 // pred_fallthru
          _
        // Predicated region
        $region161: #{tpu_custom_call.1} parent=131 // pred_check
          %p923 = pneg %p539
        $region162: #{tpu_custom_call.1} parent=131 // pred_check_branch
          %925 = sbr.rel (%p923) target = $region164
        $region163: #{tpu_custom_call.1} parent=131 // pred_region
          %927 = dma.done [#allocation15], 512
        $region164: #{tpu_custom_call.1} parent=131 // pred_fallthru
          _
        %s928 = sand.u32 %s59, 1
        %s929 = scalar_lea.sflag [#allocation3], %s928
        %s930 = sand.u32 %s59, 1
        %s931 = smul.addr %s930, 8
        %s932 = scalar_lea.vmem [#allocation2], %s931
        %p933 = pneg %p72
        %p934 = pneg %p69
        %s935 = sand.u32 %s51, 1
        %s936 = scalar_lea.sflag [#allocation6], %s935
        %s937 = sand.u32 %s85, 1
        %s938 = smul.addr %s937, 8
        %s939 = scalar_lea.vmem [#allocation5], %s938
        %p940 = pneg %p98
        %p941 = pneg %p95
        %p942 = pneg %p119
        %p943 = pneg %p116
        %p944 = pneg %p140
        %p945 = pneg %p137
        %p946 = pneg %p161
        %p947 = pneg %p158
        %p948 = pneg %p182
        %p949 = pneg %p179
        %p950 = pneg %p203
        %p951 = pneg %p200
        %p952 = pneg %p224
        %p953 = pneg %p221
        %p954 = pneg %p245
        %p955 = pneg %p242
        %p956 = pneg %p266
        %p957 = pneg %p263
        %p958 = pneg %p287
        %p959 = pneg %p284
        %p960 = pneg %p308
        %p961 = pneg %p305
        %p962 = pneg %p329
        %p963 = pneg %p326
        %p964 = pneg %p350
        %p965 = pneg %p347
        %p966 = pneg %p371
        %p967 = pneg %p368
        %p968 = pneg %p392
        %p969 = pneg %p389
        %p970 = pneg %p413
        %p971 = pneg %p410
        %p972 = pneg %p434
        %p973 = pneg %p431
        %p974 = pneg %p455
        %p975 = pneg %p452
        %p976 = pneg %p476
        %p977 = pneg %p473
        %p978 = pneg %p497
        %p979 = pneg %p494
        %p980 = pneg %p518
        %p981 = pneg %p515
        %p982 = pneg %p539
        %p983 = pneg %p536
        %p984 = pneg %p560
        %p985 = pneg %p557
        %p986 = pneg %p581
        %p987 = pneg %p578
        %p988 = pneg %p602
        %p989 = pneg %p599
        %p990 = pneg %p623
        %p991 = pneg %p620
        %p992 = pneg %p644
        %p993 = pneg %p641
        %p994 = pneg %p670
        %p995 = pneg %p667
        %s996 = sand.u32 %s657, 1
        %s997 = scalar_lea.sflag [#allocation4], %s996
        %s998 = sand.u32 %s657, 1
        %s999 = smul.addr %s998, 8
        %s1000 = scalar_lea.vmem [#allocation16], %s999
        %v1001 = vld [vmem:[%s882] sm:$0xff]
        %v1002 = vld [vmem:[%s892] sm:$0xff]
        %v1003 = vld [vmem:[%s2] sm:$0xff]
        %v1004 = vld [vmem:[%s2 + $0x8] sm:$0xff]
        %v1005 = vld [vmem:[%s2 + $0x10] sm:$0xff]
        %v1006 = vld [vmem:[%s2 + $0x18] sm:$0xff]
        %v1007 = vld [vmem:[%s3] sm:$0x1]
        %v1009 = vperm.slane %v1007, 0
        %vm1011 = vcmask 261120
        %v1013 = vsel %vm1011, %v1001, 0
        %1015 = vmatpush.msra.mxu0 0.0
        %1016 = vmatpush.msra.mxu0 0.0
        %1017 = vmatpush.msra.mxu0 0.0
        %1018 = vmatpush.msra.mxu0 0.0
        %1019 = vmatpush.msra.mxu0 0.0
        %1020 = vmatpush.msra.mxu0 0.0
        %1021 = vmatpush.msra.mxu0 0.0
        %1022 = vmatpush.msra.mxu0 0.0
        %1023 = vmatpush.msra.mxu0 0.0
        %1024 = vmatpush.msra.mxu0 0.0
        %1025 = vmatpush.msra.mxu0 0.0
        %1026 = vmatpush.msra.mxu0 0.0
        %1027 = vmatpush.msra.mxu0 %v1006
        %1028 = vmatpush.msra.mxu0 %v1005
        %1029 = vmatpush.msra.mxu0 %v1004
        %1030 = vmatpush.msra.mxu0 %v1003
        %1031 = vmatmul.f32.gmra.mxu0 %v1013
        %v1032 = vpop.f32.mrf.mxu0
        %v1033 = vadd.f32 %v1009, %v1032
        %1034 = vdwg.mxu0
        %v1035 = vld [vmem:[%s4] sm:$0xff]
        %v1036 = vld [vmem:[%s4 + $0x8] sm:$0xff]
        %v1037 = vld [vmem:[%s4 + $0x10] sm:$0xff]
        %v1038 = vld [vmem:[%s4 + $0x18] sm:$0xff]
        %v1039 = vld [vmem:[%s5] sm:$0x1]
        %v1041 = vperm.slane %v1039, 0
        %1043 = vmatpush.msra.mxu0 0.0
        %1044 = vmatpush.msra.mxu0 0.0
        %1045 = vmatpush.msra.mxu0 0.0
        %1046 = vmatpush.msra.mxu0 0.0
        %1047 = vmatpush.msra.mxu0 0.0
        %1048 = vmatpush.msra.mxu0 0.0
        %1049 = vmatpush.msra.mxu0 0.0
        %1050 = vmatpush.msra.mxu0 0.0
        %1051 = vmatpush.msra.mxu0 0.0
        %1052 = vmatpush.msra.mxu0 0.0
        %1053 = vmatpush.msra.mxu0 0.0
        %1054 = vmatpush.msra.mxu0 0.0
        %1055 = vmatpush.msra.mxu0 %v1038
        %1056 = vmatpush.msra.mxu0 %v1037
        %1057 = vmatpush.msra.mxu0 %v1036
        %1058 = vmatpush.msra.mxu0 %v1035
        %1059 = vmatmul.f32.gmra.mxu0 %v1013
        %v1060 = vpop.f32.mrf.mxu0
        %v1061 = vadd.f32 %v1041, %v1060
        %1062 = vdwg.mxu0
        %v1063 = vld [vmem:[%s6] sm:$0xff]
        %v1064 = vld [vmem:[%s6 + $0x8] sm:$0xff]
        %v1065 = vld [vmem:[%s6 + $0x10] sm:$0xff]
        %v1066 = vld [vmem:[%s6 + $0x18] sm:$0xff]
        %v1067 = vld [vmem:[%s7] sm:$0x1]
        %v1069 = vperm.slane %v1067, 0
        %1071 = vmatpush.msra.mxu0 0.0
        %1072 = vmatpush.msra.mxu0 0.0
        %1073 = vmatpush.msra.mxu0 0.0
        %1074 = vmatpush.msra.mxu0 0.0
        %1075 = vmatpush.msra.mxu0 0.0
        %1076 = vmatpush.msra.mxu0 0.0
        %1077 = vmatpush.msra.mxu0 0.0
        %1078 = vmatpush.msra.mxu0 0.0
        %1079 = vmatpush.msra.mxu0 0.0
        %1080 = vmatpush.msra.mxu0 0.0
        %1081 = vmatpush.msra.mxu0 0.0
        %1082 = vmatpush.msra.mxu0 0.0
        %1083 = vmatpush.msra.mxu0 %v1066
        %1084 = vmatpush.msra.mxu0 %v1065
        %1085 = vmatpush.msra.mxu0 %v1064
        %1086 = vmatpush.msra.mxu0 %v1063
        %1087 = vmatmul.f32.gmra.mxu0 %v1013
        %v1088 = vpop.f32.mrf.mxu0
        %v1089 = vadd.f32 %v1069, %v1088
        %1090 = vdwg.mxu0
        %vm1091 = vcmask 64512
        %v1093 = vsel %vm1091, %v1033, 0
        %v1096 = vsel %vm1091, %v1061, 0
        %1098 = vmatpush.xpose.msra.mxu0 0.0
        %1099 = vmatpush.xpose.msra.mxu0 0.0
        %1100 = vmatpush.xpose.msra.mxu0 0.0
        %1101 = vmatpush.xpose.msra.mxu0 0.0
        %1102 = vmatpush.xpose.msra.mxu0 0.0
        %1103 = vmatpush.xpose.msra.mxu0 0.0
        %1104 = vmatpush.xpose.msra.mxu0 0.0
        %1105 = vmatpush.xpose.msra.mxu0 0.0
        %1106 = vmatpush.xpose.msra.mxu0 0.0
        %1107 = vmatpush.xpose.msra.mxu0 0.0
        %1108 = vmatpush.xpose.msra.mxu0 0.0
        %1109 = vmatpush.xpose.msra.mxu0 0.0
        %1110 = vmatpush.xpose.msra.mxu0 0.0
        %1111 = vmatpush.xpose.msra.mxu0 0.0
        %1112 = vmatpush.xpose.msra.mxu0 0.0
        %1113 = vmatpush.xpose.msra.mxu0 %v1096
        %1114 = vmatmul.f32.gmra.mxu0 %v1093
        %v1115 = vpop.f32.mrf.mxu0
        %v1116 = vadd.f32 0.0, %v1115
        %1117 = vdwg.mxu0
        %v1118 = vmul.f32 %v1116, 0.35355338
        %v1119 = vsel %vm1091, %v1118, -inf
        %1120 = vmax.xlane.f32.xlu0 %v1119
        %v1121 = vpop.xlane.xlu0 %1120
        %v1122 = vsub.f32 %v1118, %v1121
        %v1123 = vmul.f32 %v1122, 1.442695
        %v1124 = vpow.pop %v1123
        %v1125 = vsel %vm1091, %v1124, 0.0
        %1126 = vadd.xlane.f32.xlu0 %v1125
        %v1127 = vpop.xlane.xlu0 %1126
        %v1128 = vrcp.pop %v1127
        %v1129 = vmul.f32 %v1127, %v1128
        %v1130 = vsub.f32 1.0, %v1129
        %v1131 = vmul.f32 %v1128, %v1130
        %v1132 = vadd.f32 %v1128, %v1131
        %vm1133 = vweird.f32 %v1127
        %vm1134 = vweird.f32 %v1128
        %vm1135 = vmor %vm1133, %vm1134
        %v1136 = vsel %vm1135, %v1128, %v1132
        %v1137 = vand.u32 2147483647, %v1127
        %vm1138 = vcmp.eq.f32.partialorder %v1137, 8.507059e+37
        %v1139 = vand.u32 %v1127, 2147483648
        %v1140 = vor.u32 1.1754944e-38, %v1139
        %v1141 = vsel %vm1138, %v1140, %v1136
        %v1142 = vmul.f32 %v1124, %v1141
        %v1144 = vsel %vm1091, %v1142, 0
        %1146 = vmatpush.msra.mxu0 0.0
        %1147 = vmatpush.msra.mxu0 0.0
        %1148 = vmatpush.msra.mxu0 0.0
        %1149 = vmatpush.msra.mxu0 0.0
        %1150 = vmatpush.msra.mxu0 0.0
        %1151 = vmatpush.msra.mxu0 0.0
        %1152 = vmatpush.msra.mxu0 0.0
        %1153 = vmatpush.msra.mxu0 0.0
        %1154 = vmatpush.msra.mxu0 0.0
        %1155 = vmatpush.msra.mxu0 0.0
        %1156 = vmatpush.msra.mxu0 0.0
        %1157 = vmatpush.msra.mxu0 0.0
        %1158 = vmatpush.msra.mxu0 0.0
        %1159 = vmatpush.msra.mxu0 0.0
        %1160 = vmatpush.msra.mxu0 0.0
        %1161 = vmatpush.msra.mxu0 %v1089
        %1162 = vmatmul.f32.gmra.mxu0 %v1144
        %v1163 = vpop.f32.mrf.mxu0
        %v1164 = vadd.f32 0.0, %v1163
        %1165 = vdwg.mxu0
        %1166 = vrot.lane.b32.xlu0 %v1033, 120
        %v1167 = vpop.permute.xlu0 %1166
        %1168 = vrot.lane.b32.xlu0 %v1061, 120
        %v1169 = vpop.permute.xlu0 %1168
        %v1170 = vsel %vm1091, %v1167, 0
        %v1172 = vsel %vm1091, %v1169, 0
        %1174 = vmatpush.xpose.msra.mxu0 0.0
        %1175 = vmatpush.xpose.msra.mxu0 0.0
        %1176 = vmatpush.xpose.msra.mxu0 0.0
        %1177 = vmatpush.xpose.msra.mxu0 0.0
        %1178 = vmatpush.xpose.msra.mxu0 0.0
        %1179 = vmatpush.xpose.msra.mxu0 0.0
        %1180 = vmatpush.xpose.msra.mxu0 0.0
        %1181 = vmatpush.xpose.msra.mxu0 0.0
        %1182 = vmatpush.xpose.msra.mxu0 0.0
        %1183 = vmatpush.xpose.msra.mxu0 0.0
        %1184 = vmatpush.xpose.msra.mxu0 0.0
        %1185 = vmatpush.xpose.msra.mxu0 0.0
        %1186 = vmatpush.xpose.msra.mxu0 0.0
        %1187 = vmatpush.xpose.msra.mxu0 0.0
        %1188 = vmatpush.xpose.msra.mxu0 0.0
        %1189 = vmatpush.xpose.msra.mxu0 %v1172
        %1190 = vmatmul.f32.gmra.mxu0 %v1170
        %v1191 = vpop.f32.mrf.mxu0
        %v1192 = vadd.f32 0.0, %v1191
        %1193 = vdwg.mxu0
        %v1194 = vmul.f32 %v1192, 0.35355338
        %v1195 = vsel %vm1091, %v1194, -inf
        %1196 = vmax.xlane.f32.xlu0 %v1195
        %v1197 = vpop.xlane.xlu0 %1196
        %v1198 = vsub.f32 %v1194, %v1197
        %v1199 = vmul.f32 %v1198, 1.442695
        %v1200 = vpow.pop %v1199
        %v1201 = vsel %vm1091, %v1200, 0.0
        %1202 = vadd.xlane.f32.xlu0 %v1201
        %v1203 = vpop.xlane.xlu0 %1202
        %v1204 = vrcp.pop %v1203
        %v1205 = vmul.f32 %v1203, %v1204
        %v1206 = vsub.f32 1.0, %v1205
        %v1207 = vmul.f32 %v1204, %v1206
        %v1208 = vadd.f32 %v1204, %v1207
        %vm1209 = vweird.f32 %v1203
        %vm1210 = vweird.f32 %v1204
        %vm1211 = vmor %vm1209, %vm1210
        %v1212 = vsel %vm1211, %v1204, %v1208
        %v1213 = vand.u32 2147483647, %v1203
        %vm1214 = vcmp.eq.f32.partialorder %v1213, 8.507059e+37
        %v1215 = vand.u32 %v1203, 2147483648
        %v1216 = vor.u32 1.1754944e-38, %v1215
        %v1217 = vsel %vm1214, %v1216, %v1212
        %v1218 = vmul.f32 %v1200, %v1217
        %1220 = vrot.lane.b32.xlu0 %v1089, 120
        %v1221 = vpop.permute.xlu0 %1220
        %v1224 = vsel %vm1091, %v1218, 0
        %1226 = vmatpush.msra.mxu0 0.0
        %1227 = vmatpush.msra.mxu0 0.0
        %1228 = vmatpush.msra.mxu0 0.0
        %1229 = vmatpush.msra.mxu0 0.0
        %1230 = vmatpush.msra.mxu0 0.0
        %1231 = vmatpush.msra.mxu0 0.0
        %1232 = vmatpush.msra.mxu0 0.0
        %1233 = vmatpush.msra.mxu0 0.0
        %1234 = vmatpush.msra.mxu0 0.0
        %1235 = vmatpush.msra.mxu0 0.0
        %1236 = vmatpush.msra.mxu0 0.0
        %1237 = vmatpush.msra.mxu0 0.0
        %1238 = vmatpush.msra.mxu0 0.0
        %1239 = vmatpush.msra.mxu0 0.0
        %1240 = vmatpush.msra.mxu0 0.0
        %1241 = vmatpush.msra.mxu0 %v1221
        %1242 = vmatmul.f32.gmra.mxu0 %v1224
        %v1243 = vpop.f32.mrf.mxu0
        %v1244 = vadd.f32 0.0, %v1243
        %1245 = vdwg.mxu0
        %1246 = vrot.lane.b32.xlu0 %v1033, 112
        %v1247 = vpop.permute.xlu0 %1246
        %1248 = vrot.lane.b32.xlu0 %v1061, 112
        %v1249 = vpop.permute.xlu0 %1248
        %v1250 = vsel %vm1091, %v1247, 0
        %v1252 = vsel %vm1091, %v1249, 0
        %1254 = vmatpush.xpose.msra.mxu0 0.0
        %1255 = vmatpush.xpose.msra.mxu0 0.0
        %1256 = vmatpush.xpose.msra.mxu0 0.0
        %1257 = vmatpush.xpose.msra.mxu0 0.0
        %1258 = vmatpush.xpose.msra.mxu0 0.0
        %1259 = vmatpush.xpose.msra.mxu0 0.0
        %1260 = vmatpush.xpose.msra.mxu0 0.0
        %1261 = vmatpush.xpose.msra.mxu0 0.0
        %1262 = vmatpush.xpose.msra.mxu0 0.0
        %1263 = vmatpush.xpose.msra.mxu0 0.0
        %1264 = vmatpush.xpose.msra.mxu0 0.0
        %1265 = vmatpush.xpose.msra.mxu0 0.0
        %1266 = vmatpush.xpose.msra.mxu0 0.0
        %1267 = vmatpush.xpose.msra.mxu0 0.0
        %1268 = vmatpush.xpose.msra.mxu0 0.0
        %1269 = vmatpush.xpose.msra.mxu0 %v1252
        %1270 = vmatmul.f32.gmra.mxu0 %v1250
        %v1271 = vpop.f32.mrf.mxu0
        %v1272 = vadd.f32 0.0, %v1271
        %1273 = vdwg.mxu0
        %v1274 = vmul.f32 %v1272, 0.35355338
        %v1275 = vsel %vm1091, %v1274, -inf
        %1276 = vmax.xlane.f32.xlu0 %v1275
        %v1277 = vpop.xlane.xlu0 %1276
        %v1278 = vsub.f32 %v1274, %v1277
        %v1279 = vmul.f32 %v1278, 1.442695
        %v1280 = vpow.pop %v1279
        %v1281 = vsel %vm1091, %v1280, 0.0
        %1282 = vadd.xlane.f32.xlu0 %v1281
        %v1283 = vpop.xlane.xlu0 %1282
        %v1284 = vrcp.pop %v1283
        %v1285 = vmul.f32 %v1283, %v1284
        %v1286 = vsub.f32 1.0, %v1285
        %v1287 = vmul.f32 %v1284, %v1286
        %v1288 = vadd.f32 %v1284, %v1287
        %vm1289 = vweird.f32 %v1283
        %vm1290 = vweird.f32 %v1284
        %vm1291 = vmor %vm1289, %vm1290
        %v1292 = vsel %vm1291, %v1284, %v1288
        %v1293 = vand.u32 2147483647, %v1283
        %vm1294 = vcmp.eq.f32.partialorder %v1293, 8.507059e+37
        %v1295 = vand.u32 %v1283, 2147483648
        %v1296 = vor.u32 1.1754944e-38, %v1295
        %v1297 = vsel %vm1294, %v1296, %v1292
        %v1298 = vmul.f32 %v1280, %v1297
        %1299 = vrot.lane.b32.xlu0 %v1089, 112
        %v1300 = vpop.permute.xlu0 %1299
        %v1303 = vsel %vm1091, %v1298, 0
        %1305 = vmatpush.msra.mxu0 0.0
        %1306 = vmatpush.msra.mxu0 0.0
        %1307 = vmatpush.msra.mxu0 0.0
        %1308 = vmatpush.msra.mxu0 0.0
        %1309 = vmatpush.msra.mxu0 0.0
        %1310 = vmatpush.msra.mxu0 0.0
        %1311 = vmatpush.msra.mxu0 0.0
        %1312 = vmatpush.msra.mxu0 0.0
        %1313 = vmatpush.msra.mxu0 0.0
        %1314 = vmatpush.msra.mxu0 0.0
        %1315 = vmatpush.msra.mxu0 0.0
        %1316 = vmatpush.msra.mxu0 0.0
        %1317 = vmatpush.msra.mxu0 0.0
        %1318 = vmatpush.msra.mxu0 0.0
        %1319 = vmatpush.msra.mxu0 0.0
        %1320 = vmatpush.msra.mxu0 %v1300
        %1321 = vmatmul.f32.gmra.mxu0 %v1303
        %v1322 = vpop.f32.mrf.mxu0
        %v1323 = vadd.f32 0.0, %v1322
        %1324 = vdwg.mxu0
        %1325 = vrot.lane.b32.xlu0 %v1033, 104
        %v1326 = vpop.permute.xlu0 %1325
        %1327 = vrot.lane.b32.xlu0 %v1061, 104
        %v1328 = vpop.permute.xlu0 %1327
        %v1329 = vsel %vm1091, %v1326, 0
        %v1331 = vsel %vm1091, %v1328, 0
        %1333 = vmatpush.xpose.msra.mxu0 0.0
        %1334 = vmatpush.xpose.msra.mxu0 0.0
        %1335 = vmatpush.xpose.msra.mxu0 0.0
        %1336 = vmatpush.xpose.msra.mxu0 0.0
        %1337 = vmatpush.xpose.msra.mxu0 0.0
        %1338 = vmatpush.xpose.msra.mxu0 0.0
        %1339 = vmatpush.xpose.msra.mxu0 0.0
        %1340 = vmatpush.xpose.msra.mxu0 0.0
        %1341 = vmatpush.xpose.msra.mxu0 0.0
        %1342 = vmatpush.xpose.msra.mxu0 0.0
        %1343 = vmatpush.xpose.msra.mxu0 0.0
        %1344 = vmatpush.xpose.msra.mxu0 0.0
        %1345 = vmatpush.xpose.msra.mxu0 0.0
        %1346 = vmatpush.xpose.msra.mxu0 0.0
        %1347 = vmatpush.xpose.msra.mxu0 0.0
        %1348 = vmatpush.xpose.msra.mxu0 %v1331
        %1349 = vmatmul.f32.gmra.mxu0 %v1329
        %v1350 = vpop.f32.mrf.mxu0
        %v1351 = vadd.f32 0.0, %v1350
        %1352 = vdwg.mxu0
        %v1353 = vmul.f32 %v1351, 0.35355338
        %v1354 = vsel %vm1091, %v1353, -inf
        %1355 = vmax.xlane.f32.xlu0 %v1354
        %v1356 = vpop.xlane.xlu0 %1355
        %v1357 = vsub.f32 %v1353, %v1356
        %v1358 = vmul.f32 %v1357, 1.442695
        %v1359 = vpow.pop %v1358
        %v1360 = vsel %vm1091, %v1359, 0.0
        %1361 = vadd.xlane.f32.xlu0 %v1360
        %v1362 = vpop.xlane.xlu0 %1361
        %v1363 = vrcp.pop %v1362
        %v1364 = vmul.f32 %v1362, %v1363
        %v1365 = vsub.f32 1.0, %v1364
        %v1366 = vmul.f32 %v1363, %v1365
        %v1367 = vadd.f32 %v1363, %v1366
        %vm1368 = vweird.f32 %v1362
        %vm1369 = vweird.f32 %v1363
        %vm1370 = vmor %vm1368, %vm1369
        %v1371 = vsel %vm1370, %v1363, %v1367
        %v1372 = vand.u32 2147483647, %v1362
        %vm1373 = vcmp.eq.f32.partialorder %v1372, 8.507059e+37
        %v1374 = vand.u32 %v1362, 2147483648
        %v1375 = vor.u32 1.1754944e-38, %v1374
        %v1376 = vsel %vm1373, %v1375, %v1371
        %v1377 = vmul.f32 %v1359, %v1376
        %1378 = vrot.lane.b32.xlu0 %v1089, 104
        %v1379 = vpop.permute.xlu0 %1378
        %v1382 = vsel %vm1091, %v1377, 0
        %1384 = vmatpush.msra.mxu0 0.0
        %1385 = vmatpush.msra.mxu0 0.0
        %1386 = vmatpush.msra.mxu0 0.0
        %1387 = vmatpush.msra.mxu0 0.0
        %1388 = vmatpush.msra.mxu0 0.0
        %1389 = vmatpush.msra.mxu0 0.0
        %1390 = vmatpush.msra.mxu0 0.0
        %1391 = vmatpush.msra.mxu0 0.0
        %1392 = vmatpush.msra.mxu0 0.0
        %1393 = vmatpush.msra.mxu0 0.0
        %1394 = vmatpush.msra.mxu0 0.0
        %1395 = vmatpush.msra.mxu0 0.0
        %1396 = vmatpush.msra.mxu0 0.0
        %1397 = vmatpush.msra.mxu0 0.0
        %1398 = vmatpush.msra.mxu0 0.0
        %1399 = vmatpush.msra.mxu0 %v1379
        %1400 = vmatmul.f32.gmra.mxu0 %v1382
        %v1401 = vpop.f32.mrf.mxu0
        %v1402 = vadd.f32 0.0, %v1401
        %1403 = vdwg.mxu0
        %1405 = vrot.lane.b32.xlu0 %v1244, 8
        %v1406 = vpop.permute.xlu0 %1405
        %1409 = vrot.lane.b32.xlu0 %v1323, 16
        %v1410 = vpop.permute.xlu0 %1409
        %1413 = vrot.lane.b32.xlu0 %v1402, 24
        %v1414 = vpop.permute.xlu0 %1413
        %v1416 = vsel %vm1091, %v1164, %v1406
        %vm1417 = vcmask 130048
        %v1418 = vsel %vm1417, %v1416, %v1410
        %vm1419 = vcmask 195584
        %v1420 = vsel %vm1419, %v1418, %v1414
        %v1421 = vld [vmem:[#allocation7] sm:$0xff]
        %v1422 = vld [vmem:[#allocation7 + $0x8] sm:$0xff]
        %v1423 = vld [vmem:[#allocation7 + $0x10] sm:$0xff]
        %v1424 = vld [vmem:[#allocation7 + $0x18] sm:$0xff]
        %v1425 = vld [vmem:[%s9] sm:$0x1]
        %v1427 = vperm.slane %v1425, 0
        %v1430 = vsel %vm1011, %v1420, 0
        %1432 = vmatpush.msra.mxu0 0.0
        %1433 = vmatpush.msra.mxu0 0.0
        %1434 = vmatpush.msra.mxu0 0.0
        %1435 = vmatpush.msra.mxu0 0.0
        %1436 = vmatpush.msra.mxu0 0.0
        %1437 = vmatpush.msra.mxu0 0.0
        %1438 = vmatpush.msra.mxu0 0.0
        %1439 = vmatpush.msra.mxu0 0.0
        %1440 = vmatpush.msra.mxu0 0.0
        %1441 = vmatpush.msra.mxu0 0.0
        %1442 = vmatpush.msra.mxu0 0.0
        %1443 = vmatpush.msra.mxu0 0.0
        %1444 = vmatpush.msra.mxu0 %v1424
        %1445 = vmatpush.msra.mxu0 %v1423
        %1446 = vmatpush.msra.mxu0 %v1422
        %1447 = vmatpush.msra.mxu0 %v1421
        %1448 = vmatmul.f32.gmra.mxu0 %v1430
        %v1449 = vpop.f32.mrf.mxu0
        %v1450 = vadd.f32 %v1427, %v1449
        %1451 = vdwg.mxu0
        %v1452 = vadd.f32 %v1001, %v1450
        %v1453 = vld [vmem:[%s10] sm:$0x1]
        %v1454 = vld [vmem:[%s11] sm:$0x1]
        %v1455 = vsel %vm1011, %v1452, 0.0
        %1456 = vadd.xlane.f32.xlu0 %v1455
        %v1457 = vpop.xlane.xlu0 %1456
        %v1458 = vrcp.pop 32.0
        %v1459 = vmul.f32 32.0, %v1458
        %v1460 = vsub.f32 1.0, %v1459
        %v1461 = vmul.f32 %v1458, %v1460
        %v1462 = vadd.f32 %v1458, %v1461
        %vm1463 = vweird.f32 %v1458
        %v1464 = vsel %vm1463, %v1458, %v1462
        %v1465 = vmul.f32 %v1457, %v1464
        %v1466 = vsub.f32 %v1452, %v1465
        %v1467 = vmul.f32 %v1466, %v1466
        %v1468 = vsel %vm1011, %v1467, 0.0
        %1469 = vadd.xlane.f32.xlu0 %v1468
        %v1470 = vpop.xlane.xlu0 %1469
        %v1471 = vmul.f32 %v1470, %v1464
        %v1472 = vadd.f32 %v1471, 1e-05
        %v1473 = vrsqrt.pop %v1472
        %v1474 = vmul.f32 %v1473, %v1472
        %v1475 = vmul.f32 %v1474, %v1473
        %v1476 = vmul.f32 0.5, %v1475
        %v1477 = vsub.f32 1.5, %v1476
        %v1478 = vmul.f32 %v1473, %v1477
        %vm1479 = vweird.f32 %v1472
        %vm1480 = vweird.f32 %v1473
        %vm1481 = vmor %vm1479, %vm1480
        %v1482 = vsel %vm1481, %v1473, %v1478
        %v1483 = vmul.f32 %v1466, %v1482
        %v1485 = vperm.slane %v1453, 0
        %v1487 = vmul.f32 %v1483, %v1485
        %v1489 = vperm.slane %v1454, 0
        %v1491 = vadd.f32 %v1487, %v1489
        %v1492 = vld [vmem:[#allocation8] sm:$0xff]
        %v1493 = vld [vmem:[#allocation8 + $0x8] sm:$0xff]
        %v1494 = vld [vmem:[#allocation8 + $0x10] sm:$0xff]
        %v1495 = vld [vmem:[#allocation8 + $0x18] sm:$0xff]
        %v1496 = vld [vmem:[%s13] sm:$0x1]
        %v1498 = vperm.slane %v1496, 0
        %v1501 = vsel %vm1011, %v1491, 0
        %1503 = vmatpush.msra.mxu0 0.0
        %1504 = vmatpush.msra.mxu0 0.0
        %1505 = vmatpush.msra.mxu0 0.0
        %1506 = vmatpush.msra.mxu0 0.0
        %1507 = vmatpush.msra.mxu0 0.0
        %1508 = vmatpush.msra.mxu0 0.0
        %1509 = vmatpush.msra.mxu0 0.0
        %1510 = vmatpush.msra.mxu0 0.0
        %1511 = vmatpush.msra.mxu0 0.0
        %1512 = vmatpush.msra.mxu0 0.0
        %1513 = vmatpush.msra.mxu0 0.0
        %1514 = vmatpush.msra.mxu0 0.0
        %1515 = vmatpush.msra.mxu0 %v1495
        %1516 = vmatpush.msra.mxu0 %v1494
        %1517 = vmatpush.msra.mxu0 %v1493
        %1518 = vmatpush.msra.mxu0 %v1492
        %1519 = vmatmul.f32.gmra.mxu0 %v1501
        %v1520 = vpop.f32.mrf.mxu0
        %v1521 = vadd.f32 %v1498, %v1520
        %1522 = vdwg.mxu0
        %v1523 = vld [vmem:[#allocation10] sm:$0xff]
        %v1524 = vld [vmem:[#allocation10 + $0x8] sm:$0xff]
        %v1525 = vld [vmem:[#allocation10 + $0x10] sm:$0xff]
        %v1526 = vld [vmem:[#allocation10 + $0x18] sm:$0xff]
        %v1527 = vld [vmem:[%s15] sm:$0x1]
        %v1529 = vperm.slane %v1527, 0
        %v1532 = vsel %vm1011, %v1002, 0
        %1534 = vmatpush.msra.mxu0 0.0
        %1535 = vmatpush.msra.mxu0 0.0
        %1536 = vmatpush.msra.mxu0 0.0
        %1537 = vmatpush.msra.mxu0 0.0
        %1538 = vmatpush.msra.mxu0 0.0
        %1539 = vmatpush.msra.mxu0 0.0
        %1540 = vmatpush.msra.mxu0 0.0
        %1541 = vmatpush.msra.mxu0 0.0
        %1542 = vmatpush.msra.mxu0 0.0
        %1543 = vmatpush.msra.mxu0 0.0
        %1544 = vmatpush.msra.mxu0 0.0
        %1545 = vmatpush.msra.mxu0 0.0
        %1546 = vmatpush.msra.mxu0 %v1526
        %1547 = vmatpush.msra.mxu0 %v1525
        %1548 = vmatpush.msra.mxu0 %v1524
        %1549 = vmatpush.msra.mxu0 %v1523
        %1550 = vmatmul.f32.gmra.mxu0 %v1532
        %v1551 = vpop.f32.mrf.mxu0
        %v1552 = vadd.f32 %v1529, %v1551
        %1553 = vdwg.mxu0
        %v1554 = vld [vmem:[#allocation11] sm:$0xff]
        %v1555 = vld [vmem:[#allocation11 + $0x8] sm:$0xff]
        %v1556 = vld [vmem:[#allocation11 + $0x10] sm:$0xff]
        %v1557 = vld [vmem:[#allocation11 + $0x18] sm:$0xff]
        %v1558 = vld [vmem:[%s17] sm:$0x1]
        %v1560 = vperm.slane %v1558, 0
        %1562 = vmatpush.msra.mxu0 0.0
        %1563 = vmatpush.msra.mxu0 0.0
        %1564 = vmatpush.msra.mxu0 0.0
        %1565 = vmatpush.msra.mxu0 0.0
        %1566 = vmatpush.msra.mxu0 0.0
        %1567 = vmatpush.msra.mxu0 0.0
        %1568 = vmatpush.msra.mxu0 0.0
        %1569 = vmatpush.msra.mxu0 0.0
        %1570 = vmatpush.msra.mxu0 0.0
        %1571 = vmatpush.msra.mxu0 0.0
        %1572 = vmatpush.msra.mxu0 0.0
        %1573 = vmatpush.msra.mxu0 0.0
        %1574 = vmatpush.msra.mxu0 %v1557
        %1575 = vmatpush.msra.mxu0 %v1556
        %1576 = vmatpush.msra.mxu0 %v1555
        %1577 = vmatpush.msra.mxu0 %v1554
        %1578 = vmatmul.f32.gmra.mxu0 %v1532
        %v1579 = vpop.f32.mrf.mxu0
        %v1580 = vadd.f32 %v1560, %v1579
        %1581 = vdwg.mxu0
        %v1583 = vsel %vm1091, %v1521, 0
        %v1586 = vsel %vm1091, %v1552, 0
        %1588 = vmatpush.xpose.msra.mxu0 0.0
        %1589 = vmatpush.xpose.msra.mxu0 0.0
        %1590 = vmatpush.xpose.msra.mxu0 0.0
        %1591 = vmatpush.xpose.msra.mxu0 0.0
        %1592 = vmatpush.xpose.msra.mxu0 0.0
        %1593 = vmatpush.xpose.msra.mxu0 0.0
        %1594 = vmatpush.xpose.msra.mxu0 0.0
        %1595 = vmatpush.xpose.msra.mxu0 0.0
        %1596 = vmatpush.xpose.msra.mxu0 0.0
        %1597 = vmatpush.xpose.msra.mxu0 0.0
        %1598 = vmatpush.xpose.msra.mxu0 0.0
        %1599 = vmatpush.xpose.msra.mxu0 0.0
        %1600 = vmatpush.xpose.msra.mxu0 0.0
        %1601 = vmatpush.xpose.msra.mxu0 0.0
        %1602 = vmatpush.xpose.msra.mxu0 0.0
        %1603 = vmatpush.xpose.msra.mxu0 %v1586
        %1604 = vmatmul.f32.gmra.mxu0 %v1583
        %v1605 = vpop.f32.mrf.mxu0
        %v1606 = vadd.f32 0.0, %v1605
        %1607 = vdwg.mxu0
        %v1608 = vmul.f32 %v1606, 0.35355338
        %v1609 = vsel %vm1091, %v1608, -inf
        %1610 = vmax.xlane.f32.xlu0 %v1609
        %v1611 = vpop.xlane.xlu0 %1610
        %v1612 = vsub.f32 %v1608, %v1611
        %v1613 = vmul.f32 %v1612, 1.442695
        %v1614 = vpow.pop %v1613
        %v1615 = vsel %vm1091, %v1614, 0.0
        %1616 = vadd.xlane.f32.xlu0 %v1615
        %v1617 = vpop.xlane.xlu0 %1616
        %v1618 = vrcp.pop %v1617
        %v1619 = vmul.f32 %v1617, %v1618
        %v1620 = vsub.f32 1.0, %v1619
        %v1621 = vmul.f32 %v1618, %v1620
        %v1622 = vadd.f32 %v1618, %v1621
        %vm1623 = vweird.f32 %v1617
        %vm1624 = vweird.f32 %v1618
        %vm1625 = vmor %vm1623, %vm1624
        %v1626 = vsel %vm1625, %v1618, %v1622
        %v1627 = vand.u32 2147483647, %v1617
        %vm1628 = vcmp.eq.f32.partialorder %v1627, 8.507059e+37
        %v1629 = vand.u32 %v1617, 2147483648
        %v1630 = vor.u32 1.1754944e-38, %v1629
        %v1631 = vsel %vm1628, %v1630, %v1626
        %v1632 = vmul.f32 %v1614, %v1631
        %v1634 = vsel %vm1091, %v1632, 0
        %1636 = vmatpush.msra.mxu0 0.0
        %1637 = vmatpush.msra.mxu0 0.0
        %1638 = vmatpush.msra.mxu0 0.0
        %1639 = vmatpush.msra.mxu0 0.0
        %1640 = vmatpush.msra.mxu0 0.0
        %1641 = vmatpush.msra.mxu0 0.0
        %1642 = vmatpush.msra.mxu0 0.0
        %1643 = vmatpush.msra.mxu0 0.0
        %1644 = vmatpush.msra.mxu0 0.0
        %1645 = vmatpush.msra.mxu0 0.0
        %1646 = vmatpush.msra.mxu0 0.0
        %1647 = vmatpush.msra.mxu0 0.0
        %1648 = vmatpush.msra.mxu0 0.0
        %1649 = vmatpush.msra.mxu0 0.0
        %1650 = vmatpush.msra.mxu0 0.0
        %1651 = vmatpush.msra.mxu0 %v1580
        %1652 = vmatmul.f32.gmra.mxu0 %v1634
        %v1653 = vpop.f32.mrf.mxu0
        %v1654 = vadd.f32 0.0, %v1653
        %1655 = vdwg.mxu0
        %1656 = vrot.lane.b32.xlu0 %v1521, 120
        %v1657 = vpop.permute.xlu0 %1656
        %1658 = vrot.lane.b32.xlu0 %v1552, 120
        %v1659 = vpop.permute.xlu0 %1658
        %v1660 = vsel %vm1091, %v1657, 0
        %v1662 = vsel %vm1091, %v1659, 0
        %1664 = vmatpush.xpose.msra.mxu0 0.0
        %1665 = vmatpush.xpose.msra.mxu0 0.0
        %1666 = vmatpush.xpose.msra.mxu0 0.0
        %1667 = vmatpush.xpose.msra.mxu0 0.0
        %1668 = vmatpush.xpose.msra.mxu0 0.0
        %1669 = vmatpush.xpose.msra.mxu0 0.0
        %1670 = vmatpush.xpose.msra.mxu0 0.0
        %1671 = vmatpush.xpose.msra.mxu0 0.0
        %1672 = vmatpush.xpose.msra.mxu0 0.0
        %1673 = vmatpush.xpose.msra.mxu0 0.0
        %1674 = vmatpush.xpose.msra.mxu0 0.0
        %1675 = vmatpush.xpose.msra.mxu0 0.0
        %1676 = vmatpush.xpose.msra.mxu0 0.0
        %1677 = vmatpush.xpose.msra.mxu0 0.0
        %1678 = vmatpush.xpose.msra.mxu0 0.0
        %1679 = vmatpush.xpose.msra.mxu0 %v1662
        %1680 = vmatmul.f32.gmra.mxu0 %v1660
        %v1681 = vpop.f32.mrf.mxu0
        %v1682 = vadd.f32 0.0, %v1681
        %1683 = vdwg.mxu0
        %v1684 = vmul.f32 %v1682, 0.35355338
        %v1685 = vsel %vm1091, %v1684, -inf
        %1686 = vmax.xlane.f32.xlu0 %v1685
        %v1687 = vpop.xlane.xlu0 %1686
        %v1688 = vsub.f32 %v1684, %v1687
        %v1689 = vmul.f32 %v1688, 1.442695
        %v1690 = vpow.pop %v1689
        %v1691 = vsel %vm1091, %v1690, 0.0
        %1692 = vadd.xlane.f32.xlu0 %v1691
        %v1693 = vpop.xlane.xlu0 %1692
        %v1694 = vrcp.pop %v1693
        %v1695 = vmul.f32 %v1693, %v1694
        %v1696 = vsub.f32 1.0, %v1695
        %v1697 = vmul.f32 %v1694, %v1696
        %v1698 = vadd.f32 %v1694, %v1697
        %vm1699 = vweird.f32 %v1693
        %vm1700 = vweird.f32 %v1694
        %vm1701 = vmor %vm1699, %vm1700
        %v1702 = vsel %vm1701, %v1694, %v1698
        %v1703 = vand.u32 2147483647, %v1693
        %vm1704 = vcmp.eq.f32.partialorder %v1703, 8.507059e+37
        %v1705 = vand.u32 %v1693, 2147483648
        %v1706 = vor.u32 1.1754944e-38, %v1705
        %v1707 = vsel %vm1704, %v1706, %v1702
        %v1708 = vmul.f32 %v1690, %v1707
        %1710 = vrot.lane.b32.xlu0 %v1580, 120
        %v1711 = vpop.permute.xlu0 %1710
        %v1714 = vsel %vm1091, %v1708, 0
        %1716 = vmatpush.msra.mxu0 0.0
        %1717 = vmatpush.msra.mxu0 0.0
        %1718 = vmatpush.msra.mxu0 0.0
        %1719 = vmatpush.msra.mxu0 0.0
        %1720 = vmatpush.msra.mxu0 0.0
        %1721 = vmatpush.msra.mxu0 0.0
        %1722 = vmatpush.msra.mxu0 0.0
        %1723 = vmatpush.msra.mxu0 0.0
        %1724 = vmatpush.msra.mxu0 0.0
        %1725 = vmatpush.msra.mxu0 0.0
        %1726 = vmatpush.msra.mxu0 0.0
        %1727 = vmatpush.msra.mxu0 0.0
        %1728 = vmatpush.msra.mxu0 0.0
        %1729 = vmatpush.msra.mxu0 0.0
        %1730 = vmatpush.msra.mxu0 0.0
        %1731 = vmatpush.msra.mxu0 %v1711
        %1732 = vmatmul.f32.gmra.mxu0 %v1714
        %v1733 = vpop.f32.mrf.mxu0
        %v1734 = vadd.f32 0.0, %v1733
        %1735 = vdwg.mxu0
        %1736 = vrot.lane.b32.xlu0 %v1521, 112
        %v1737 = vpop.permute.xlu0 %1736
        %1738 = vrot.lane.b32.xlu0 %v1552, 112
        %v1739 = vpop.permute.xlu0 %1738
        %v1740 = vsel %vm1091, %v1737, 0
        %v1742 = vsel %vm1091, %v1739, 0
        %1744 = vmatpush.xpose.msra.mxu0 0.0
        %1745 = vmatpush.xpose.msra.mxu0 0.0
        %1746 = vmatpush.xpose.msra.mxu0 0.0
        %1747 = vmatpush.xpose.msra.mxu0 0.0
        %1748 = vmatpush.xpose.msra.mxu0 0.0
        %1749 = vmatpush.xpose.msra.mxu0 0.0
        %1750 = vmatpush.xpose.msra.mxu0 0.0
        %1751 = vmatpush.xpose.msra.mxu0 0.0
        %1752 = vmatpush.xpose.msra.mxu0 0.0
        %1753 = vmatpush.xpose.msra.mxu0 0.0
        %1754 = vmatpush.xpose.msra.mxu0 0.0
        %1755 = vmatpush.xpose.msra.mxu0 0.0
        %1756 = vmatpush.xpose.msra.mxu0 0.0
        %1757 = vmatpush.xpose.msra.mxu0 0.0
        %1758 = vmatpush.xpose.msra.mxu0 0.0
        %1759 = vmatpush.xpose.msra.mxu0 %v1742
        %1760 = vmatmul.f32.gmra.mxu0 %v1740
        %v1761 = vpop.f32.mrf.mxu0
        %v1762 = vadd.f32 0.0, %v1761
        %1763 = vdwg.mxu0
        %v1764 = vmul.f32 %v1762, 0.35355338
        %v1765 = vsel %vm1091, %v1764, -inf
        %1766 = vmax.xlane.f32.xlu0 %v1765
        %v1767 = vpop.xlane.xlu0 %1766
        %v1768 = vsub.f32 %v1764, %v1767
        %v1769 = vmul.f32 %v1768, 1.442695
        %v1770 = vpow.pop %v1769
        %v1771 = vsel %vm1091, %v1770, 0.0
        %1772 = vadd.xlane.f32.xlu0 %v1771
        %v1773 = vpop.xlane.xlu0 %1772
        %v1774 = vrcp.pop %v1773
        %v1775 = vmul.f32 %v1773, %v1774
        %v1776 = vsub.f32 1.0, %v1775
        %v1777 = vmul.f32 %v1774, %v1776
        %v1778 = vadd.f32 %v1774, %v1777
        %vm1779 = vweird.f32 %v1773
        %vm1780 = vweird.f32 %v1774
        %vm1781 = vmor %vm1779, %vm1780
        %v1782 = vsel %vm1781, %v1774, %v1778
        %v1783 = vand.u32 2147483647, %v1773
        %vm1784 = vcmp.eq.f32.partialorder %v1783, 8.507059e+37
        %v1785 = vand.u32 %v1773, 2147483648
        %v1786 = vor.u32 1.1754944e-38, %v1785
        %v1787 = vsel %vm1784, %v1786, %v1782
        %v1788 = vmul.f32 %v1770, %v1787
        %1789 = vrot.lane.b32.xlu0 %v1580, 112
        %v1790 = vpop.permute.xlu0 %1789
        %v1793 = vsel %vm1091, %v1788, 0
        %1795 = vmatpush.msra.mxu0 0.0
        %1796 = vmatpush.msra.mxu0 0.0
        %1797 = vmatpush.msra.mxu0 0.0
        %1798 = vmatpush.msra.mxu0 0.0
        %1799 = vmatpush.msra.mxu0 0.0
        %1800 = vmatpush.msra.mxu0 0.0
        %1801 = vmatpush.msra.mxu0 0.0
        %1802 = vmatpush.msra.mxu0 0.0
        %1803 = vmatpush.msra.mxu0 0.0
        %1804 = vmatpush.msra.mxu0 0.0
        %1805 = vmatpush.msra.mxu0 0.0
        %1806 = vmatpush.msra.mxu0 0.0
        %1807 = vmatpush.msra.mxu0 0.0
        %1808 = vmatpush.msra.mxu0 0.0
        %1809 = vmatpush.msra.mxu0 0.0
        %1810 = vmatpush.msra.mxu0 %v1790
        %1811 = vmatmul.f32.gmra.mxu0 %v1793
        %v1812 = vpop.f32.mrf.mxu0
        %v1813 = vadd.f32 0.0, %v1812
        %1814 = vdwg.mxu0
        %1815 = vrot.lane.b32.xlu0 %v1521, 104
        %v1816 = vpop.permute.xlu0 %1815
        %1817 = vrot.lane.b32.xlu0 %v1552, 104
        %v1818 = vpop.permute.xlu0 %1817
        %v1819 = vsel %vm1091, %v1816, 0
        %v1821 = vsel %vm1091, %v1818, 0
        %1823 = vmatpush.xpose.msra.mxu0 0.0
        %1824 = vmatpush.xpose.msra.mxu0 0.0
        %1825 = vmatpush.xpose.msra.mxu0 0.0
        %1826 = vmatpush.xpose.msra.mxu0 0.0
        %1827 = vmatpush.xpose.msra.mxu0 0.0
        %1828 = vmatpush.xpose.msra.mxu0 0.0
        %1829 = vmatpush.xpose.msra.mxu0 0.0
        %1830 = vmatpush.xpose.msra.mxu0 0.0
        %1831 = vmatpush.xpose.msra.mxu0 0.0
        %1832 = vmatpush.xpose.msra.mxu0 0.0
        %1833 = vmatpush.xpose.msra.mxu0 0.0
        %1834 = vmatpush.xpose.msra.mxu0 0.0
        %1835 = vmatpush.xpose.msra.mxu0 0.0
        %1836 = vmatpush.xpose.msra.mxu0 0.0
        %1837 = vmatpush.xpose.msra.mxu0 0.0
        %1838 = vmatpush.xpose.msra.mxu0 %v1821
        %1839 = vmatmul.f32.gmra.mxu0 %v1819
        %v1840 = vpop.f32.mrf.mxu0
        %v1841 = vadd.f32 0.0, %v1840
        %1842 = vdwg.mxu0
        %v1843 = vmul.f32 %v1841, 0.35355338
        %v1844 = vsel %vm1091, %v1843, -inf
        %1845 = vmax.xlane.f32.xlu0 %v1844
        %v1846 = vpop.xlane.xlu0 %1845
        %v1847 = vsub.f32 %v1843, %v1846
        %v1848 = vmul.f32 %v1847, 1.442695
        %v1849 = vpow.pop %v1848
        %v1850 = vsel %vm1091, %v1849, 0.0
        %1851 = vadd.xlane.f32.xlu0 %v1850
        %v1852 = vpop.xlane.xlu0 %1851
        %v1853 = vrcp.pop %v1852
        %v1854 = vmul.f32 %v1852, %v1853
        %v1855 = vsub.f32 1.0, %v1854
        %v1856 = vmul.f32 %v1853, %v1855
        %v1857 = vadd.f32 %v1853, %v1856
        %vm1858 = vweird.f32 %v1852
        %vm1859 = vweird.f32 %v1853
        %vm1860 = vmor %vm1858, %vm1859
        %v1861 = vsel %vm1860, %v1853, %v1857
        %v1862 = vand.u32 2147483647, %v1852
        %vm1863 = vcmp.eq.f32.partialorder %v1862, 8.507059e+37
        %v1864 = vand.u32 %v1852, 2147483648
        %v1865 = vor.u32 1.1754944e-38, %v1864
        %v1866 = vsel %vm1863, %v1865, %v1861
        %v1867 = vmul.f32 %v1849, %v1866
        %1868 = vrot.lane.b32.xlu0 %v1580, 104
        %v1869 = vpop.permute.xlu0 %1868
        %v1872 = vsel %vm1091, %v1867, 0
        %1874 = vmatpush.msra.mxu0 0.0
        %1875 = vmatpush.msra.mxu0 0.0
        %1876 = vmatpush.msra.mxu0 0.0
        %1877 = vmatpush.msra.mxu0 0.0
        %1878 = vmatpush.msra.mxu0 0.0
        %1879 = vmatpush.msra.mxu0 0.0
        %1880 = vmatpush.msra.mxu0 0.0
        %1881 = vmatpush.msra.mxu0 0.0
        %1882 = vmatpush.msra.mxu0 0.0
        %1883 = vmatpush.msra.mxu0 0.0
        %1884 = vmatpush.msra.mxu0 0.0
        %1885 = vmatpush.msra.mxu0 0.0
        %1886 = vmatpush.msra.mxu0 0.0
        %1887 = vmatpush.msra.mxu0 0.0
        %1888 = vmatpush.msra.mxu0 0.0
        %1889 = vmatpush.msra.mxu0 %v1869
        %1890 = vmatmul.f32.gmra.mxu0 %v1872
        %v1891 = vpop.f32.mrf.mxu0
        %v1892 = vadd.f32 0.0, %v1891
        %1893 = vdwg.mxu0
        %1895 = vrot.lane.b32.xlu0 %v1734, 8
        %v1896 = vpop.permute.xlu0 %1895
        %1899 = vrot.lane.b32.xlu0 %v1813, 16
        %v1900 = vpop.permute.xlu0 %1899
        %1903 = vrot.lane.b32.xlu0 %v1892, 24
        %v1904 = vpop.permute.xlu0 %1903
        %v1906 = vsel %vm1091, %v1654, %v1896
        %v1907 = vsel %vm1417, %v1906, %v1900
        %v1908 = vsel %vm1419, %v1907, %v1904
        %v1909 = vld [vmem:[#allocation13] sm:$0xff]
        %v1910 = vld [vmem:[#allocation13 + $0x8] sm:$0xff]
        %v1911 = vld [vmem:[#allocation13 + $0x10] sm:$0xff]
        %v1912 = vld [vmem:[#allocation13 + $0x18] sm:$0xff]
        %v1913 = vld [vmem:[%s19] sm:$0x1]
        %v1915 = vperm.slane %v1913, 0
        %v1918 = vsel %vm1011, %v1908, 0
        %1920 = vmatpush.msra.mxu0 0.0
        %1921 = vmatpush.msra.mxu0 0.0
        %1922 = vmatpush.msra.mxu0 0.0
        %1923 = vmatpush.msra.mxu0 0.0
        %1924 = vmatpush.msra.mxu0 0.0
        %1925 = vmatpush.msra.mxu0 0.0
        %1926 = vmatpush.msra.mxu0 0.0
        %1927 = vmatpush.msra.mxu0 0.0
        %1928 = vmatpush.msra.mxu0 0.0
        %1929 = vmatpush.msra.mxu0 0.0
        %1930 = vmatpush.msra.mxu0 0.0
        %1931 = vmatpush.msra.mxu0 0.0
        %1932 = vmatpush.msra.mxu0 %v1912
        %1933 = vmatpush.msra.mxu0 %v1911
        %1934 = vmatpush.msra.mxu0 %v1910
        %1935 = vmatpush.msra.mxu0 %v1909
        %1936 = vmatmul.f32.gmra.mxu0 %v1918
        %v1937 = vpop.f32.mrf.mxu0
        %v1938 = vadd.f32 %v1915, %v1937
        %1939 = vdwg.mxu0
        %v1940 = vadd.f32 %v1491, %v1938
        %v1941 = vld [vmem:[%s20] sm:$0x1]
        %v1942 = vld [vmem:[%s21] sm:$0x1]
        %v1943 = vsel %vm1011, %v1940, 0.0
        %1944 = vadd.xlane.f32.xlu0 %v1943
        %v1945 = vpop.xlane.xlu0 %1944
        %v1946 = vmul.f32 %v1945, %v1464
        %v1947 = vsub.f32 %v1940, %v1946
        %v1948 = vmul.f32 %v1947, %v1947
        %v1949 = vsel %vm1011, %v1948, 0.0
        %1950 = vadd.xlane.f32.xlu0 %v1949
        %v1951 = vpop.xlane.xlu0 %1950
        %v1952 = vmul.f32 %v1951, %v1464
        %v1953 = vadd.f32 %v1952, 1e-05
        %v1954 = vrsqrt.pop %v1953
        %v1955 = vmul.f32 %v1954, %v1953
        %v1956 = vmul.f32 %v1955, %v1954
        %v1957 = vmul.f32 0.5, %v1956
        %v1958 = vsub.f32 1.5, %v1957
        %v1959 = vmul.f32 %v1954, %v1958
        %vm1960 = vweird.f32 %v1953
        %vm1961 = vweird.f32 %v1954
        %vm1962 = vmor %vm1960, %vm1961
        %v1963 = vsel %vm1962, %v1954, %v1959
        %v1964 = vmul.f32 %v1947, %v1963
        %v1966 = vperm.slane %v1941, 0
        %v1968 = vmul.f32 %v1964, %v1966
        %v1970 = vperm.slane %v1942, 0
        %v1972 = vadd.f32 %v1968, %v1970
        %v1973 = vld [vmem:[#allocation14] sm:$0xff]
        %v1974 = vld [vmem:[#allocation14 + $0x8] sm:$0xff]
        %v1975 = vld [vmem:[#allocation14 + $0x10] sm:$0xff]
        %v1976 = vld [vmem:[#allocation14 + $0x18] sm:$0xff]
        %v1977 = vld [vmem:[%s23] sm:$0x1]
        %v1979 = vperm.slane %v1977, 0
        %v1982 = vsel %vm1011, %v1972, 0
        %1984 = vmatpush.msra.mxu0 0.0
        %1985 = vmatpush.msra.mxu0 0.0
        %1986 = vmatpush.msra.mxu0 0.0
        %1987 = vmatpush.msra.mxu0 0.0
        %1988 = vmatpush.msra.mxu0 0.0
        %1989 = vmatpush.msra.mxu0 0.0
        %1990 = vmatpush.msra.mxu0 0.0
        %1991 = vmatpush.msra.mxu0 0.0
        %1992 = vmatpush.msra.mxu0 0.0
        %1993 = vmatpush.msra.mxu0 0.0
        %1994 = vmatpush.msra.mxu0 0.0
        %1995 = vmatpush.msra.mxu0 0.0
        %1996 = vmatpush.msra.mxu0 %v1976
        %1997 = vmatpush.msra.mxu0 %v1975
        %1998 = vmatpush.msra.mxu0 %v1974
        %1999 = vmatpush.msra.mxu0 %v1973
        %2000 = vmatmul.f32.gmra.mxu0 %v1982
        %v2001 = vpop.f32.mrf.mxu0
        %v2002 = vadd.f32 %v1979, %v2001
        %2003 = vdwg.mxu0
        %v2004 = vmax.f32 %v2002, 0.0
        %v2005 = vld [vmem:[%s24] sm:$0xff]
        %v2006 = vld [vmem:[%s24 + $0x8] sm:$0xff]
        %v2007 = vld [vmem:[%s24 + $0x10] sm:$0xff]
        %v2008 = vld [vmem:[%s24 + $0x18] sm:$0xff]
        %v2009 = vld [vmem:[%s24 + $0x20] sm:$0xff]
        %v2010 = vld [vmem:[%s24 + $0x28] sm:$0xff]
        %v2011 = vld [vmem:[%s24 + $0x30] sm:$0xff]
        %v2012 = vld [vmem:[%s24 + $0x38] sm:$0xff]
        %v2013 = vld [vmem:[%s25] sm:$0x1]
        %v2015 = vperm.slane %v2013, 0
        %vm2017 = vcmask 523264
        %v2019 = vsel %vm2017, %v2004, 0
        %2021 = vmatpush.msra.mxu0 0.0
        %2022 = vmatpush.msra.mxu0 0.0
        %2023 = vmatpush.msra.mxu0 0.0
        %2024 = vmatpush.msra.mxu0 0.0
        %2025 = vmatpush.msra.mxu0 0.0
        %2026 = vmatpush.msra.mxu0 0.0
        %2027 = vmatpush.msra.mxu0 0.0
        %2028 = vmatpush.msra.mxu0 0.0
        %2029 = vmatpush.msra.mxu0 %v2012
        %2030 = vmatpush.msra.mxu0 %v2011
        %2031 = vmatpush.msra.mxu0 %v2010
        %2032 = vmatpush.msra.mxu0 %v2009
        %2033 = vmatpush.msra.mxu0 %v2008
        %2034 = vmatpush.msra.mxu0 %v2007
        %2035 = vmatpush.msra.mxu0 %v2006
        %2036 = vmatpush.msra.mxu0 %v2005
        %2037 = vmatmul.f32.gmra.mxu0 %v2019
        %v2038 = vpop.f32.mrf.mxu0
        %v2039 = vadd.f32 %v2015, %v2038
        %2040 = vdwg.mxu0
        %v2041 = vadd.f32 %v1972, %v2039
        %v2042 = vld [vmem:[%s26] sm:$0x1]
        %v2043 = vld [vmem:[%s27] sm:$0x1]
        %v2044 = vsel %vm1011, %v2041, 0.0
        %2045 = vadd.xlane.f32.xlu0 %v2044
        %v2046 = vpop.xlane.xlu0 %2045
        %v2047 = vmul.f32 %v2046, %v1464
        %v2048 = vsub.f32 %v2041, %v2047
        %v2049 = vmul.f32 %v2048, %v2048
        %v2050 = vsel %vm1011, %v2049, 0.0
        %2051 = vadd.xlane.f32.xlu0 %v2050
        %v2052 = vpop.xlane.xlu0 %2051
        %v2053 = vmul.f32 %v2052, %v1464
        %v2054 = vadd.f32 %v2053, 1e-05
        %v2055 = vrsqrt.pop %v2054
        %v2056 = vmul.f32 %v2055, %v2054
        %v2057 = vmul.f32 %v2056, %v2055
        %v2058 = vmul.f32 0.5, %v2057
        %v2059 = vsub.f32 1.5, %v2058
        %v2060 = vmul.f32 %v2055, %v2059
        %vm2061 = vweird.f32 %v2054
        %vm2062 = vweird.f32 %v2055
        %vm2063 = vmor %vm2061, %vm2062
        %v2064 = vsel %vm2063, %v2055, %v2060
        %v2065 = vmul.f32 %v2048, %v2064
        %v2067 = vperm.slane %v2042, 0
        %v2069 = vmul.f32 %v2065, %v2067
        %v2071 = vperm.slane %v2043, 0
        %v2073 = vadd.f32 %v2069, %v2071
        %2074 = vst.msk [vmem:[%s1000] sm:$0xff] %vm1011, %v2073
        %s2075 = sand.u32 %s657, 1
        %s2076 = scalar_lea.sflag [#allocation4], %s2075
        %s2077 = sand.u32 %s657, 1
        %s2078 = smul.addr %s2077, 8
        %s2079 = scalar_lea.vmem [#allocation16], %s2078
        // Predicated region
        $region165: #{tpu_custom_call.1} parent=131 // pred_check
          %p2080 = pneg %p667
        $region166: #{tpu_custom_call.1} parent=131 // pred_check_branch
          %2082 = sbr.rel (%p2080) target = $region168
        $region167: #{tpu_custom_call.1} parent=131 // pred_region
          %2084 = vsyncadd %s2076, 0
          %s2085 = smul.addr %s51, 8
          %s2086 = scalar_lea.hbm %s28, %s2085
          %s2088 = sshll.u32 %s2079, 4
          %s2089 = int_to_ptr.vmem [resolvable:$true] %s2088
          %s2090 = sshll.u32 %s2086, 4
          %s2091 = int_to_ptr.hbm [resolvable:$true] %s2090
          %2093 = dma.vmem_to_hbm [thread:$0]  %s2089, 128, %s2091, %s2076
        $region168: #{tpu_custom_call.1} parent=131 // pred_fallthru
          _
      $region132: #{tpu_custom_call.1} parent=5 // pred_fallthru
        _
      %p2094 = scmp.le.s32.totalorder 2, %s46
      // Predicated region
      $region169: #{tpu_custom_call.1} parent=5 // pred_check
        %p2095 = pneg %p2094
      $region170: #{tpu_custom_call.1} parent=5 // pred_check_branch
        %2097 = sbr.rel (%p2095) target = $region172
      $region171: #{tpu_custom_call.1} parent=5 // pred_region
        %s2098 = ssub.s32 %s46, 2
        // Predicated region
        $region173: #{tpu_custom_call.1} parent=171 // pred_check
          %p2099 = pneg %p673
        $region174: #{tpu_custom_call.1} parent=171 // pred_check_branch
          %2101 = sbr.rel (%p2099) target = $region176
        $region175: #{tpu_custom_call.1} parent=171 // pred_region
          %s2102 = sand.u32 %s658, 1
          %s2103 = scalar_lea.sflag [#allocation4], %s2102
          %s2104 = sand.u32 %s658, 1
          %s2105 = smul.addr %s2104, 8
          %s2106 = scalar_lea.vmem [#allocation16], %s2105
          %2108 = dma.done %s2103, 128
        $region176: #{tpu_custom_call.1} parent=171 // pred_fallthru
          _
      $region172: #{tpu_custom_call.1} parent=5 // pred_fallthru
        _
    $region6: #{tpu_custom_call.1} parent=1 // loop_footer
      %s50 = sadd.s32 1, %s46
    $region7: #{tpu_custom_call.1} parent=1 // loop_footer_branch
      %45 = sbr.rel target = $region3
    $region8: #{tpu_custom_call.1} parent=1 // loop_exit
      _
    %2109 = vsyncpa [#allocation3], 1
    %s2110 = scalar_lea.sflag [#allocation3], 1
    %2111 = vsyncpa %s2110, 1
    %2112 = vsyncpa [#allocation6], 1
    %s2113 = scalar_lea.sflag [#allocation6], 1
    %2114 = vsyncpa %s2113, 1
    %2115 = vsyncpa [#allocation9], 1
    %2116 = vsyncpa [#allocation12], 1
    %2117 = vsyncpa [#allocation15], 1
    %2118 = vsyncpa [#allocation4], 1
    %s2119 = scalar_lea.sflag [#allocation4], 1
    %2120 = vsyncpa %s2119, 1

</llo_original>
